<compile_context>
chip_gen: v7x
topology: tpu7x:2x2x1
jax: 0.10.0
libtpu: 0.0.40
codegen_flags: <defaults>
</compile_context>

<pallas_src>
import functools

import jax
import jax.numpy as jnp
import numpy as np
from jax.experimental import pallas as pl
from jax.experimental.pallas import tpu as pltpu


# ----------------------------- fused layer kernel -----------------------------
def fused_gat_layer_kernel(x_ref, w_ref, sp_ref, f1_ref, f2_ref, m_ref, o_ref, *,
                           alpha, nheads, fout, apply_elu):
    """All heads of one SpGraphAttentionLayer on a (tm dest-rows, tk src-rows) tile.

    Per head h:
      s[i, j]  = f1[i, h] + f2[h, j]                 (== a1_h.h_i + a2_h.h_j)
      e[i, j]  = exp(-leakyrelu(s)) where adj[i,j]!=0 else 0
      hp_h    += e @ h_src[:, h-slice]               (accumulated over source tiles)
    Finalize (last source tile): per-head LayerNorm (+ ELU), concatenated store.
    """
    k = pl.program_id(1)

    @pl.when(k == 0)
    def _():
        o_ref[...] = jnp.zeros_like(o_ref)

    sp = sp_ref[...]                      # (3, H*fout): [bias; gamma; beta]
    bias = sp[0:1, :]

    # h for the *source* rows of this tile, all heads in one wide matmul.
    h_src = jnp.dot(x_ref[...].astype(jnp.bfloat16),
                    w_ref[...].astype(jnp.bfloat16),
                    preferred_element_type=jnp.float32) + bias        # (tk, H*fout)

    f1 = f1_ref[...]                      # (tm, H)  -- a1.h for destination rows
    f2 = f2_ref[...]                      # (H, tk)  -- a2.h for source rows
    msk = m_ref[...] != 0                 # (tm, tk) adjacency nonzero pattern (int8)

    parts = []
    for hd in range(nheads):
        s = f1[:, hd:hd + 1] + f2[hd:hd + 1, :]                       # (tm, tk)
        leaky = jnp.where(s >= 0, s, alpha * s)                       # LeakyReLU
        e = jnp.where(msk, jnp.exp(-leaky), 0.0)                      # masked, NaN-free
        hh = h_src[:, hd * fout:(hd + 1) * fout]                      # (tk, fout)
        parts.append(jnp.dot(e.astype(jnp.bfloat16), hh.astype(jnp.bfloat16),
                             preferred_element_type=jnp.float32))     # (tm, fout)
    o_ref[...] += jnp.concatenate(parts, axis=1)                      # (tm, H*fout)

    @pl.when(k == pl.num_programs(1) - 1)
    def _():
        gamma, beta = sp[1:2, :], sp[2:3, :]
        hp = o_ref[...]
        outs = []
        for hd in range(nheads):
            sl = slice(hd * fout, (hd + 1) * fout)
            hph = hp[:, sl]
            mu = jnp.mean(hph, axis=-1, keepdims=True)
            var = jnp.mean(jnp.square(hph - mu), axis=-1, keepdims=True)
            y = (hph - mu) * jax.lax.rsqrt(var + 1e-5)                # eps = torch default
            y = y * gamma[:, sl] + beta[:, sl]
            if apply_elu:
                # ELU(alpha=1); exp(min(y,0))-1 == expm1(y) for y<=0 up to ~1e-7.
                y = jnp.where(y > 0, y, jnp.exp(jnp.minimum(y, 0.0)) - 1.0)
            outs.append(y)
        o_ref[...] = jnp.concatenate(outs, axis=1)


def _pick_tile(n, candidates=(256, 128)):
    for c in candidates:
        if n % c == 0:
            return c
    return n


def _attention_logit_terms(x, layer):
    """f1 (N, H) and f2 (H, N): a.h folded onto x via (a W) . x + a . b."""
    f1 = x @ layer["p1"].T + layer["c1"][None, :]
    f2 = (x @ layer["p2"].T + layer["c2"][None, :]).T
    return f1, f2


def fused_gat_layer(x, mask_i8, layer, *, alpha, apply_elu=True):
    """All heads of one layer: x (N, fin) -> (N, nheads * fout)."""
    n, fin = x.shape
    nheads, fout = layer["nheads"], layer["fout"]
    hf = nheads * fout

    f1, f2 = _attention_logit_terms(x, layer)        # tiny (N,H)/(H,N) precomputes
    tm, tk = _pick_tile(n), _pick_tile(n)

    kernel = functools.partial(fused_gat_layer_kernel, alpha=alpha,
                               nheads=nheads, fout=fout, apply_elu=apply_elu)
    return pl.pallas_call(
        kernel,
        out_shape=jax.ShapeDtypeStruct((n, hf), jnp.float32),
        grid=(n // tm, n // tk),
        in_specs=[
            pl.BlockSpec((tk, fin), lambda i, k: (k, 0)),     # x (source rows)
            pl.BlockSpec((fin, hf), lambda i, k: (0, 0)),     # W_all (all heads)
            pl.BlockSpec((3, hf), lambda i, k: (0, 0)),       # [bias; gamma; beta]
            pl.BlockSpec((tm, nheads), lambda i, k: (i, 0)),  # f1 (dest rows)
            pl.BlockSpec((nheads, tk), lambda i, k: (0, k)),  # f2 (source rows)
            pl.BlockSpec((tm, tk), lambda i, k: (i, k)),      # adjacency mask (int8)
        ],
        out_specs=pl.BlockSpec((tm, hf), lambda i, k: (i, 0)),
        compiler_params=pltpu.CompilerParams(
            dimension_semantics=("parallel", "arbitrary"),
            vmem_limit_bytes=32 * 1024 * 1024),
    )(x, layer["w_all"], layer["small"], f1, f2, mask_i8)


# ------------------------------ parameter packing ------------------------------
def make_head_params(key, fin, fout):
    """Synthetic init matching SpGraphAttentionLayer.__init__ shapes."""
    kw, kb, ka = jax.random.split(key, 3)
    w_lin = jax.random.normal(kw, (fout, fin), jnp.float32) * np.sqrt(2.0 / fin)
    bound = 1.0 / np.sqrt(fin)
    b = jax.random.uniform(kb, (fout,), jnp.float32, minval=-bound, maxval=bound)
    a = jax.random.normal(ka, (1, 2 * fout), jnp.float32) * np.sqrt(1.0 / fout)
    return dict(w_lin=w_lin, b=b, a=a,
                gamma=jnp.ones((fout,), jnp.float32),
                beta=jnp.zeros((fout,), jnp.float32))


def pack_layer(heads, fin, fout):
    """Stack per-head params into the fused-layer layout."""
    w_all = jnp.concatenate([h["w_lin"].T for h in heads], axis=1)        # (fin, H*fout)
    bias = jnp.concatenate([h["b"] for h in heads])
    gamma = jnp.concatenate([h["gamma"] for h in heads])
    beta = jnp.concatenate([h["beta"] for h in heads])
    small = jnp.stack([bias, gamma, beta], axis=0)                        # (3, H*fout)
    p1 = jnp.stack([(h["a"][:, :fout] @ h["w_lin"])[0] for h in heads])   # (H, fin)
    c1 = jnp.stack([(h["a"][:, :fout] @ h["b"][:, None])[0, 0] for h in heads])
    p2 = jnp.stack([(h["a"][:, fout:] @ h["w_lin"])[0] for h in heads])   # (H, fin)
    c2 = jnp.stack([(h["a"][:, fout:] @ h["b"][:, None])[0, 0] for h in heads])
    return dict(w_all=w_all, small=small, p1=p1, c1=c1, p2=p2, c2=c2,
                nheads=len(heads), fout=fout, fin=fin)


def spgat_forward(embeds, mask_i8, heads_layer, out_layer, *, alpha):
    # TODO(synk): dropout layers are identity (eval mode).
    x = fused_gat_layer(embeds, mask_i8, heads_layer, alpha=alpha, apply_elu=True)
    # out_att has concat=False (no internal ELU); SpGAT applies F.elu right after,
    # so the ELU is fused here as well.  Note: GATCF's layer has no e_rowsum
    # normalization (unlike stock pyGAT), matching the given torch module.
    return fused_gat_layer(x, mask_i8, out_layer, alpha=alpha, apply_elu=True)


# ---------------- plain-JAX reference (numerical sanity check) -----------------
def _ref_layer(x, mask_i8, layer, *, alpha, apply_elu):
    nheads, fout = layer["nheads"], layer["fout"]
    f1, f2 = _attention_logit_terms(x, layer)
    h = jnp.dot(x.astype(jnp.bfloat16), layer["w_all"].astype(jnp.bfloat16),
                preferred_element_type=jnp.float32) + layer["small"][0:1, :]
    msk = mask_i8 != 0
    outs = []
    for hd in range(nheads):
        s = f1[:, hd:hd + 1] + f2[hd:hd + 1, :]
        leaky = jnp.where(s >= 0, s, alpha * s)
        e = jnp.where(msk, jnp.exp(-leaky), 0.0)
        hh = h[:, hd * fout:(hd + 1) * fout]
        hp = jnp.dot(e.astype(jnp.bfloat16), hh.astype(jnp.bfloat16),
                     preferred_element_type=jnp.float32)
        mu = hp.mean(-1, keepdims=True)
        var = jnp.square(hp - mu).mean(-1, keepdims=True)
        y = (hp - mu) * jax.lax.rsqrt(var + 1e-5)
        y = (y * layer["small"][1:2, hd * fout:(hd + 1) * fout]
             + layer["small"][2:3, hd * fout:(hd + 1) * fout])
        if apply_elu:
            y = jnp.where(y > 0, y, jnp.exp(jnp.minimum(y, 0.0)) - 1.0)
        outs.append(y)
    return jnp.concatenate(outs, axis=1)


def _ref_forward(embeds, mask_i8, heads_layer, out_layer, *, alpha):
    x = _ref_layer(embeds, mask_i8, heads_layer, alpha=alpha, apply_elu=True)
    return _ref_layer(x, mask_i8, out_layer, alpha=alpha, apply_elu=True)


if __name__ == "__main__":
    # Module-consistent small shapes: N nodes, nfeat input dim, nhid per head.
    N, NFEAT, NHID, NHEADS = 128, 64, 32, 2
    ALPHA = 0.2  # LeakyReLU negative slope

    key = jax.random.PRNGKey(0)
    k_emb, k_adj, k_heads, k_out = jax.random.split(key, 4)

    embeds = jax.random.normal(k_emb, (N, NFEAT), dtype=jnp.float32)

    # Synthetic symmetric adjacency with self-loops (stands in for
    # get_adj_nrom_matrix; only its nonzero pattern is used by the layer).
    r = jax.random.uniform(k_adj, (N, N))
    adj = (r < 0.1).astype(jnp.float32)
    adj = jnp.maximum(adj, adj.T)
    adj = jnp.maximum(adj, jnp.eye(N, dtype=jnp.float32))
    adj_mask_i8 = (adj != 0).astype(jnp.int8)

    head_raw = [make_head_params(hk, NFEAT, NHID)
                for hk in jax.random.split(k_heads, NHEADS)]
    heads_layer = pack_layer(head_raw, NFEAT, NHID)
    out_layer = pack_layer([make_head_params(k_out, NHID * NHEADS, NFEAT)],
                           NHID * NHEADS, NFEAT)

    out = spgat_forward(embeds, adj_mask_i8, heads_layer, out_layer, alpha=ALPHA)
    out = jax.block_until_ready(out)
    assert out.shape == (N, NFEAT)

    ref = _ref_forward(embeds, adj_mask_i8, heads_layer, out_layer, alpha=ALPHA)
    np.testing.assert_allclose(np.asarray(out), np.asarray(ref), rtol=2e-2, atol=2e-2)

    print("KERNEL_OK")
</pallas_src>

<mosaic_0001>
module attributes {stable_mosaic.version = 11 : i64} {
  func.func @fused_gat_layer_kernel(%arg0: i32, %arg1: i32, %arg2: memref<128x64xf32, #tpu.memory_space<vmem>>, %arg3: memref<64x64xf32, #tpu.memory_space<vmem>>, %arg4: memref<3x64xf32, #tpu.memory_space<vmem>>, %arg5: memref<128x2xf32, #tpu.memory_space<vmem>>, %arg6: memref<2x128xf32, #tpu.memory_space<vmem>>, %arg7: memref<128x128xi8, #tpu.memory_space<vmem>>, %arg8: memref<128x64xf32, #tpu.memory_space<vmem>>) attributes {dimension_semantics = [#tpu.dimension_semantics<parallel>, #tpu.dimension_semantics<arbitrary>], iteration_bounds = array<i64: 1, 1>, scalar_prefetch = 0 : i64, scratch_operands = 0 : i64, tpu.core_type = #tpu.core_type<tc>, window_params = [{transform_indices = @transform_0, window_bounds = array<i64: 128, 64>}, {pipeline_mode = #tpu.pipeline_mode<synchronous>, transform_indices = @transform_1, window_bounds = array<i64: 64, 64>}, {pipeline_mode = #tpu.pipeline_mode<synchronous>, transform_indices = @transform_2, window_bounds = array<i64: 3, 64>}, {transform_indices = @transform_3, window_bounds = array<i64: 128, 2>}, {transform_indices = @transform_4, window_bounds = array<i64: 2, 128>}, {transform_indices = @transform_5, window_bounds = array<i64: 128, 128>}, {transform_indices = @transform_6, window_bounds = array<i64: 128, 64>}]} {
    %c0_i32 = arith.constant 0 : i32
    %0 = arith.cmpi eq, %arg1, %c0_i32 : i32
    %1 = arith.extui %0 : i1 to i32
    %c0_i32_0 = arith.constant 0 : i32
    %2 = arith.cmpi ne, %1, %c0_i32_0 : i32
    scf.if %2 {
      %cst_28 = arith.constant 0.000000e+00 : f32
      %62 = vector.broadcast %cst_28 : f32 to vector<128x64xf32>
      %c0_29 = arith.constant 0 : index
      %c0_30 = arith.constant 0 : index
      %63 = vector.load %arg8[%c0_29, %c0_30] : memref<128x64xf32, #tpu.memory_space<vmem>>, vector<128x64xf32>
      tpu.vector_store %arg8[%c0_29, %c0_30], %62 {strides = array<i32>} : memref<128x64xf32, #tpu.memory_space<vmem>>, vector<128x64xf32>,
    } else {
    }
    %c0 = arith.constant 0 : index
    %c0_1 = arith.constant 0 : index
    %3 = vector.load %arg4[%c0, %c0_1] : memref<3x64xf32, #tpu.memory_space<vmem>>, vector<3x64xf32>
    %4 = vector.extract_strided_slice %3 {offsets = [0, 0], sizes = [1, 64], strides = [1, 1]} : vector<3x64xf32> to vector<1x64xf32>
    %c0_2 = arith.constant 0 : index
    %c0_3 = arith.constant 0 : index
    %5 = vector.load %arg2[%c0_2, %c0_3] : memref<128x64xf32, #tpu.memory_space<vmem>>, vector<128x64xf32>
    %6 = arith.truncf %5 : vector<128x64xf32> to vector<128x64xbf16>
    %c0_4 = arith.constant 0 : index
    %c0_5 = arith.constant 0 : index
    %7 = vector.load %arg3[%c0_4, %c0_5] : memref<64x64xf32, #tpu.memory_space<vmem>>, vector<64x64xf32>
    %8 = arith.truncf %7 : vector<64x64xf32> to vector<64x64xbf16>
    %cst = arith.constant dense<0.000000e+00> : vector<128x64xf32>
    %9 = tpu.matmul %6, %8, %cst {dimension_numbers = #tpu.dot_dimension_numbers<[1], [0], [0], [1], [0, 0, 1, 1], [], []>} : vector<128x64xbf16>, vector<64x64xbf16>, vector<128x64xf32> -> vector<128x64xf32>
    %10 = vector.broadcast %4 : vector<1x64xf32> to vector<128x64xf32>
    %11 = arith.addf %9, %10 : vector<128x64xf32>
    %c0_6 = arith.constant 0 : index
    %c0_7 = arith.constant 0 : index
    %12 = vector.load %arg5[%c0_6, %c0_7] : memref<128x2xf32, #tpu.memory_space<vmem>>, vector<128x2xf32>
    %c0_8 = arith.constant 0 : index
    %c0_9 = arith.constant 0 : index
    %13 = vector.load %arg6[%c0_8, %c0_9] : memref<2x128xf32, #tpu.memory_space<vmem>>, vector<2x128xf32>
    %c0_10 = arith.constant 0 : index
    %c0_11 = arith.constant 0 : index
    %14 = vector.load %arg7[%c0_10, %c0_11] : memref<128x128xi8, #tpu.memory_space<vmem>>, vector<128x128xi8>
    %c0_i8 = arith.constant 0 : i8
    %15 = vector.broadcast %c0_i8 : i8 to vector<128x128xi8>
    %16 = arith.cmpi ne, %14, %15 : vector<128x128xi8>
    %17 = vector.extract_strided_slice %12 {offsets = [0, 0], sizes = [128, 1], strides = [1, 1]} : vector<128x2xf32> to vector<128x1xf32>
    %18 = vector.extract_strided_slice %13 {offsets = [0, 0], sizes = [1, 128], strides = [1, 1]} : vector<2x128xf32> to vector<1x128xf32>
    %19 = vector.broadcast %17 : vector<128x1xf32> to vector<128x128xf32>
    %20 = vector.broadcast %18 : vector<1x128xf32> to vector<128x128xf32>
    %21 = arith.addf %19, %20 : vector<128x128xf32>
    %cst_12 = arith.constant 0.000000e+00 : f32
    %22 = vector.broadcast %cst_12 : f32 to vector<128x128xf32>
    %23 = arith.cmpf oge, %21, %22 : vector<128x128xf32>
    %cst_13 = arith.constant 2.000000e-01 : f32
    %24 = vector.broadcast %cst_13 : f32 to vector<128x128xf32>
    %25 = arith.mulf %24, %21 : vector<128x128xf32>
    %26 = arith.select %23, %21, %25 : vector<128x128xi1>, vector<128x128xf32>
    %cst_14 = arith.constant 0.000000e+00 : f32
    %27 = vector.broadcast %cst_14 : f32 to vector<128x128xf32>
    %28 = arith.subf %27, %26 : vector<128x128xf32>
    %29 = math.exp %28 : vector<128x128xf32>
    %cst_15 = arith.constant 0.000000e+00 : f32
    %30 = vector.broadcast %cst_15 : f32 to vector<128x128xf32>
    %31 = arith.select %16, %29, %30 : vector<128x128xi1>, vector<128x128xf32>
    %32 = vector.extract_strided_slice %11 {offsets = [0, 0], sizes = [128, 32], strides = [1, 1]} : vector<128x64xf32> to vector<128x32xf32>
    %33 = arith.truncf %31 : vector<128x128xf32> to vector<128x128xbf16>
    %34 = arith.truncf %32 : vector<128x32xf32> to vector<128x32xbf16>
    %cst_16 = arith.constant dense<0.000000e+00> : vector<128x32xf32>
    %35 = tpu.matmul %33, %34, %cst_16 {dimension_numbers = #tpu.dot_dimension_numbers<[1], [0], [0], [1], [0, 0, 1, 1], [], []>} : vector<128x128xbf16>, vector<128x32xbf16>, vector<128x32xf32> -> vector<128x32xf32>
    %36 = vector.extract_strided_slice %12 {offsets = [0, 1], sizes = [128, 1], strides = [1, 1]} : vector<128x2xf32> to vector<128x1xf32>
    %37 = vector.extract_strided_slice %13 {offsets = [1, 0], sizes = [1, 128], strides = [1, 1]} : vector<2x128xf32> to vector<1x128xf32>
    %38 = vector.broadcast %36 : vector<128x1xf32> to vector<128x128xf32>
    %39 = vector.broadcast %37 : vector<1x128xf32> to vector<128x128xf32>
    %40 = arith.addf %38, %39 : vector<128x128xf32>
    %cst_17 = arith.constant 0.000000e+00 : f32
    %41 = vector.broadcast %cst_17 : f32 to vector<128x128xf32>
    %42 = arith.cmpf oge, %40, %41 : vector<128x128xf32>
    %cst_18 = arith.constant 2.000000e-01 : f32
    %43 = vector.broadcast %cst_18 : f32 to vector<128x128xf32>
    %44 = arith.mulf %43, %40 : vector<128x128xf32>
    %45 = arith.select %42, %40, %44 : vector<128x128xi1>, vector<128x128xf32>
    %cst_19 = arith.constant 0.000000e+00 : f32
    %46 = vector.broadcast %cst_19 : f32 to vector<128x128xf32>
    %47 = arith.subf %46, %45 : vector<128x128xf32>
    %48 = math.exp %47 : vector<128x128xf32>
    %cst_20 = arith.constant 0.000000e+00 : f32
    %49 = vector.broadcast %cst_20 : f32 to vector<128x128xf32>
    %50 = arith.select %16, %48, %49 : vector<128x128xi1>, vector<128x128xf32>
    %51 = vector.extract_strided_slice %11 {offsets = [0, 32], sizes = [128, 32], strides = [1, 1]} : vector<128x64xf32> to vector<128x32xf32>
    %52 = arith.truncf %50 : vector<128x128xf32> to vector<128x128xbf16>
    %53 = arith.truncf %51 : vector<128x32xf32> to vector<128x32xbf16>
    %cst_21 = arith.constant dense<0.000000e+00> : vector<128x32xf32>
    %54 = tpu.matmul %52, %53, %cst_21 {dimension_numbers = #tpu.dot_dimension_numbers<[1], [0], [0], [1], [0, 0, 1, 1], [], []>} : vector<128x128xbf16>, vector<128x32xbf16>, vector<128x32xf32> -> vector<128x32xf32>
    %c0_22 = arith.constant 0 : index
    %c0_23 = arith.constant 0 : index
    %55 = vector.load %arg8[%c0_22, %c0_23] : memref<128x64xf32, #tpu.memory_space<vmem>>, vector<128x64xf32>
    %56 = tpu.concatenate %35, %54 in 1 : vector<128x32xf32>, vector<128x32xf32> -> vector<128x64xf32>
    %57 = arith.addf %55, %56 : vector<128x64xf32>
    %c0_24 = arith.constant 0 : index
    %c0_25 = arith.constant 0 : index
    %58 = vector.load %arg8[%c0_24, %c0_25] : memref<128x64xf32, #tpu.memory_space<vmem>>, vector<128x64xf32>
    tpu.vector_store %arg8[%c0_24, %c0_25], %57 {strides = array<i32>} : memref<128x64xf32, #tpu.memory_space<vmem>>, vector<128x64xf32>,
    %c0_i32_26 = arith.constant 0 : i32
    %59 = arith.cmpi eq, %arg1, %c0_i32_26 : i32
    %60 = arith.extui %59 : i1 to i32
    %c0_i32_27 = arith.constant 0 : i32
    %61 = arith.cmpi ne, %60, %c0_i32_27 : i32
    scf.if %61 {
      %62 = vector.extract_strided_slice %3 {offsets = [1, 0], sizes = [1, 64], strides = [1, 1]} : vector<3x64xf32> to vector<1x64xf32>
      %63 = vector.extract_strided_slice %3 {offsets = [2, 0], sizes = [1, 64], strides = [1, 1]} : vector<3x64xf32> to vector<1x64xf32>
      %c0_28 = arith.constant 0 : index
      %c0_29 = arith.constant 0 : index
      %64 = vector.load %arg8[%c0_28, %c0_29] : memref<128x64xf32, #tpu.memory_space<vmem>>, vector<128x64xf32>
      %65 = vector.extract_strided_slice %64 {offsets = [0, 0], sizes = [128, 32], strides = [1, 1]} : vector<128x64xf32> to vector<128x32xf32>
      %cst_30 = arith.constant dense<0.000000e+00> : vector<128xf32>
      %66 = vector.multi_reduction <add>, %65, %cst_30 [1] : vector<128x32xf32> to vector<128xf32>
      %67 = vector.shape_cast %66 : vector<128xf32> to vector<128x1xf32>
      %cst_31 = arith.constant 3.200000e+01 : f32
      %68 = vector.broadcast %cst_31 : f32 to vector<128x1xf32>
      %69 = arith.divf %67, %68 : vector<128x1xf32>
      %70 = vector.broadcast %69 : vector<128x1xf32> to vector<128x32xf32>
      %71 = arith.subf %65, %70 : vector<128x32xf32>
      %72 = arith.mulf %71, %71 : vector<128x32xf32>
      %cst_32 = arith.constant dense<0.000000e+00> : vector<128xf32>
      %73 = vector.multi_reduction <add>, %72, %cst_32 [1] : vector<128x32xf32> to vector<128xf32>
      %74 = vector.shape_cast %73 : vector<128xf32> to vector<128x1xf32>
      %cst_33 = arith.constant 3.200000e+01 : f32
      %75 = vector.broadcast %cst_33 : f32 to vector<128x1xf32>
      %76 = arith.divf %74, %75 : vector<128x1xf32>
      %77 = vector.broadcast %69 : vector<128x1xf32> to vector<128x32xf32>
      %78 = arith.subf %65, %77 : vector<128x32xf32>
      %cst_34 = arith.constant 9.99999974E-6 : f32
      %79 = vector.broadcast %cst_34 : f32 to vector<128x1xf32>
      %80 = arith.addf %76, %79 : vector<128x1xf32>
      %81 = math.rsqrt %80 : vector<128x1xf32>
      %82 = vector.broadcast %81 : vector<128x1xf32> to vector<128x32xf32>
      %83 = arith.mulf %78, %82 : vector<128x32xf32>
      %84 = vector.extract_strided_slice %62 {offsets = [0, 0], sizes = [1, 32], strides = [1, 1]} : vector<1x64xf32> to vector<1x32xf32>
      %85 = vector.broadcast %84 : vector<1x32xf32> to vector<128x32xf32>
      %86 = arith.mulf %83, %85 : vector<128x32xf32>
      %87 = vector.extract_strided_slice %63 {offsets = [0, 0], sizes = [1, 32], strides = [1, 1]} : vector<1x64xf32> to vector<1x32xf32>
      %88 = vector.broadcast %87 : vector<1x32xf32> to vector<128x32xf32>
      %89 = arith.addf %86, %88 : vector<128x32xf32>
      %cst_35 = arith.constant 0.000000e+00 : f32
      %90 = vector.broadcast %cst_35 : f32 to vector<128x32xf32>
      %91 = arith.cmpf ogt, %89, %90 : vector<128x32xf32>
      %cst_36 = arith.constant 0.000000e+00 : f32
      %92 = vector.broadcast %cst_36 : f32 to vector<128x32xf32>
      %93 = arith.minimumf %89, %92 : vector<128x32xf32>
      %94 = math.exp %93 : vector<128x32xf32>
      %cst_37 = arith.constant 1.000000e+00 : f32
      %95 = vector.broadcast %cst_37 : f32 to vector<128x32xf32>
      %96 = arith.subf %94, %95 : vector<128x32xf32>
      %97 = arith.select %91, %89, %96 : vector<128x32xi1>, vector<128x32xf32>
      %98 = vector.extract_strided_slice %64 {offsets = [0, 32], sizes = [128, 32], strides = [1, 1]} : vector<128x64xf32> to vector<128x32xf32>
      %cst_38 = arith.constant dense<0.000000e+00> : vector<128xf32>
      %99 = vector.multi_reduction <add>, %98, %cst_38 [1] : vector<128x32xf32> to vector<128xf32>
      %100 = vector.shape_cast %99 : vector<128xf32> to vector<128x1xf32>
      %cst_39 = arith.constant 3.200000e+01 : f32
      %101 = vector.broadcast %cst_39 : f32 to vector<128x1xf32>
      %102 = arith.divf %100, %101 : vector<128x1xf32>
      %103 = vector.broadcast %102 : vector<128x1xf32> to vector<128x32xf32>
      %104 = arith.subf %98, %103 : vector<128x32xf32>
      %105 = arith.mulf %104, %104 : vector<128x32xf32>
      %cst_40 = arith.constant dense<0.000000e+00> : vector<128xf32>
      %106 = vector.multi_reduction <add>, %105, %cst_40 [1] : vector<128x32xf32> to vector<128xf32>
      %107 = vector.shape_cast %106 : vector<128xf32> to vector<128x1xf32>
      %cst_41 = arith.constant 3.200000e+01 : f32
      %108 = vector.broadcast %cst_41 : f32 to vector<128x1xf32>
      %109 = arith.divf %107, %108 : vector<128x1xf32>
      %110 = vector.broadcast %102 : vector<128x1xf32> to vector<128x32xf32>
      %111 = arith.subf %98, %110 : vector<128x32xf32>
      %cst_42 = arith.constant 9.99999974E-6 : f32
      %112 = vector.broadcast %cst_42 : f32 to vector<128x1xf32>
      %113 = arith.addf %109, %112 : vector<128x1xf32>
      %114 = math.rsqrt %113 : vector<128x1xf32>
      %115 = vector.broadcast %114 : vector<128x1xf32> to vector<128x32xf32>
      %116 = arith.mulf %111, %115 : vector<128x32xf32>
      %117 = vector.extract_strided_slice %62 {offsets = [0, 32], sizes = [1, 32], strides = [1, 1]} : vector<1x64xf32> to vector<1x32xf32>
      %118 = vector.broadcast %117 : vector<1x32xf32> to vector<128x32xf32>
      %119 = arith.mulf %116, %118 : vector<128x32xf32>
      %120 = vector.extract_strided_slice %63 {offsets = [0, 32], sizes = [1, 32], strides = [1, 1]} : vector<1x64xf32> to vector<1x32xf32>
      %121 = vector.broadcast %120 : vector<1x32xf32> to vector<128x32xf32>
      %122 = arith.addf %119, %121 : vector<128x32xf32>
      %cst_43 = arith.constant 0.000000e+00 : f32
      %123 = vector.broadcast %cst_43 : f32 to vector<128x32xf32>
      %124 = arith.cmpf ogt, %122, %123 : vector<128x32xf32>
      %cst_44 = arith.constant 0.000000e+00 : f32
      %125 = vector.broadcast %cst_44 : f32 to vector<128x32xf32>
      %126 = arith.minimumf %122, %125 : vector<128x32xf32>
      %127 = math.exp %126 : vector<128x32xf32>
      %cst_45 = arith.constant 1.000000e+00 : f32
      %128 = vector.broadcast %cst_45 : f32 to vector<128x32xf32>
      %129 = arith.subf %127, %128 : vector<128x32xf32>
      %130 = arith.select %124, %122, %129 : vector<128x32xi1>, vector<128x32xf32>
      %131 = tpu.concatenate %97, %130 in 1 : vector<128x32xf32>, vector<128x32xf32> -> vector<128x64xf32>
      %c0_46 = arith.constant 0 : index
      %c0_47 = arith.constant 0 : index
      %132 = vector.load %arg8[%c0_46, %c0_47] : memref<128x64xf32, #tpu.memory_space<vmem>>, vector<128x64xf32>
      tpu.vector_store %arg8[%c0_46, %c0_47], %131 {strides = array<i32>} : memref<128x64xf32, #tpu.memory_space<vmem>>, vector<128x64xf32>,
    } else {
    }
    return
  }
  func.func @transform_0(%arg0: i32, %arg1: i32) -> (i32, i32) {
    %c0_i32 = arith.constant 0 : i32
    %c0_i32_0 = arith.constant 0 : i32
    return %arg1, %c0_i32 : i32, i32
  }
  func.func @transform_1(%arg0: i32, %arg1: i32) -> (i32, i32) {
    %c0_i32 = arith.constant 0 : i32
    %c0_i32_0 = arith.constant 0 : i32
    %c0_i32_1 = arith.constant 0 : i32
    return %c0_i32, %c0_i32_0 : i32, i32
  }
  func.func @transform_2(%arg0: i32, %arg1: i32) -> (i32, i32) {
    %c0_i32 = arith.constant 0 : i32
    %c0_i32_0 = arith.constant 0 : i32
    %c0_i32_1 = arith.constant 0 : i32
    return %c0_i32, %c0_i32_0 : i32, i32
  }
  func.func @transform_3(%arg0: i32, %arg1: i32) -> (i32, i32) {
    %c0_i32 = arith.constant 0 : i32
    %c0_i32_0 = arith.constant 0 : i32
    return %arg0, %c0_i32 : i32, i32
  }
  func.func @transform_4(%arg0: i32, %arg1: i32) -> (i32, i32) {
    %c0_i32 = arith.constant 0 : i32
    %c0_i32_0 = arith.constant 0 : i32
    return %c0_i32, %arg1 : i32, i32
  }
  func.func @transform_5(%arg0: i32, %arg1: i32) -> (i32, i32) {
    %c0_i32 = arith.constant 0 : i32
    return %arg0, %arg1 : i32, i32
  }
  func.func @transform_6(%arg0: i32, %arg1: i32) -> (i32, i32) {
    %c0_i32 = arith.constant 0 : i32
    %c0_i32_0 = arith.constant 0 : i32
    return %arg0, %c0_i32 : i32, i32
  }
}

</mosaic_0001>

<llo_original>
// kernel: tpu_custom_call.1
$region0: #{tpu_custom_call.1}
  #allocation0 [shape = 'u32[]', space=smem, size = 0x4, offset = 0x4, fixed_abs, tag = 'smem constant byte address 0x4 - core index']
  #allocation1 [shape = 'u32[144,128]{1,0:T(1,128)}', space=vmem, size = 0x12000, scoped, tag = 'internal scratch']
  %s0 = inlined_call_operand.vmem [shape: f32[128,64], index: 0, kind: input, shape index: {}]
  %s1 = inlined_call_operand.vmem [shape: f32[64,64], index: 1, kind: input, shape index: {}]
  %s2 = inlined_call_operand.vmem [shape: f32[3,64], index: 2, kind: input, shape index: {}]
  %s3 = inlined_call_operand.vmem [shape: f32[128,2], index: 3, kind: input, shape index: {}]
  %s4 = inlined_call_operand.vmem [shape: f32[2,128], index: 4, kind: input, shape index: {}]
  %s5 = inlined_call_operand.vmem [shape: s8[128,128], index: 5, kind: input, shape index: {}]
  %s6 = inlined_call_operand.vmem [shape: f32[128,64], index: 6, kind: output, shape index: {}]
  %s7 = sld [smem:[#allocation0]]
  $region42: #{tpu_custom_call.1} parent=0
    _
  %s9 = ssub.s32 1, %s7
  %s10 = scalar_select 0, %s9, %s7
  // Predicated region
  $region2: #{tpu_custom_call.1} parent=0 // pred_check
    _
  $region3: #{tpu_custom_call.1} parent=0 // pred_check_branch
    %12 = sbr.rel (0) target = $region5
  $region4: #{tpu_custom_call.1} parent=0 // pred_region
    _
  $region5: #{tpu_custom_call.1} parent=0 // pred_fallthru
    _
  // Predicated region
  $region6: #{tpu_custom_call.1} parent=0 // pred_check
    _
  $region7: #{tpu_custom_call.1} parent=0 // pred_check_branch
    %14 = sbr.rel (0) target = $region9
  $region8: #{tpu_custom_call.1} parent=0 // pred_region
    _
  $region9: #{tpu_custom_call.1} parent=0 // pred_fallthru
    _
  // Predicated region
  $region10: #{tpu_custom_call.1} parent=0 // pred_check
    _
  $region11: #{tpu_custom_call.1} parent=0 // pred_check_branch
    %16 = sbr.rel (0) target = $region13
  $region12: #{tpu_custom_call.1} parent=0 // pred_region
    _
  $region13: #{tpu_custom_call.1} parent=0 // pred_fallthru
    _
  // Predicated region
  $region14: #{tpu_custom_call.1} parent=0 // pred_check
    _
  $region15: #{tpu_custom_call.1} parent=0 // pred_check_branch
    %18 = sbr.rel (0) target = $region17
  $region16: #{tpu_custom_call.1} parent=0 // pred_region
    _
  $region17: #{tpu_custom_call.1} parent=0 // pred_fallthru
    _
  // Predicated region
  $region18: #{tpu_custom_call.1} parent=0 // pred_check
    _
  $region19: #{tpu_custom_call.1} parent=0 // pred_check_branch
    %20 = sbr.rel (0) target = $region21
  $region20: #{tpu_custom_call.1} parent=0 // pred_region
    _
  $region21: #{tpu_custom_call.1} parent=0 // pred_fallthru
    _
  // Predicated region
  $region22: #{tpu_custom_call.1} parent=0 // pred_check
    _
  $region23: #{tpu_custom_call.1} parent=0 // pred_check_branch
    %22 = sbr.rel (0) target = $region25
  $region24: #{tpu_custom_call.1} parent=0 // pred_region
    _
  $region25: #{tpu_custom_call.1} parent=0 // pred_fallthru
    _
  %p26 = scmp.eq.s32.totalorder 0, 0
  // Predicated region
  $region26: #{tpu_custom_call.1} parent=0 // pred_check
    %p27 = pneg %p26
  $region27: #{tpu_custom_call.1} parent=0 // pred_check_branch
    %29 = sbr.rel (%p27) target = $region29
  $region28: #{tpu_custom_call.1} parent=0 // pred_region
    %vm30 = vcmask 523264
    %31 = vst.msk [vmem:[%s6] sm:$0xff] %vm30, 0.0
    %32 = vst.msk [vmem:[%s6 + $0x8] sm:$0xff] %vm30, 0.0
    %33 = vst.msk [vmem:[%s6 + $0x10] sm:$0xff] %vm30, 0.0
    %34 = vst.msk [vmem:[%s6 + $0x18] sm:$0xff] %vm30, 0.0
    %35 = vst.msk [vmem:[%s6 + $0x20] sm:$0xff] %vm30, 0.0
    %36 = vst.msk [vmem:[%s6 + $0x28] sm:$0xff] %vm30, 0.0
    %37 = vst.msk [vmem:[%s6 + $0x30] sm:$0xff] %vm30, 0.0
    %38 = vst.msk [vmem:[%s6 + $0x38] sm:$0xff] %vm30, 0.0
    %39 = vst.msk [vmem:[%s6 + $0x40] sm:$0xff] %vm30, 0.0
    %40 = vst.msk [vmem:[%s6 + $0x48] sm:$0xff] %vm30, 0.0
    %41 = vst.msk [vmem:[%s6 + $0x50] sm:$0xff] %vm30, 0.0
    %42 = vst.msk [vmem:[%s6 + $0x58] sm:$0xff] %vm30, 0.0
    %43 = vst.msk [vmem:[%s6 + $0x60] sm:$0xff] %vm30, 0.0
    %44 = vst.msk [vmem:[%s6 + $0x68] sm:$0xff] %vm30, 0.0
    %45 = vst.msk [vmem:[%s6 + $0x70] sm:$0xff] %vm30, 0.0
    %46 = vst.msk [vmem:[%s6 + $0x78] sm:$0xff] %vm30, 0.0
  $region29: #{tpu_custom_call.1} parent=0 // pred_fallthru
    _
  %v47 = vld [vmem:[%s2] sm:$0x7]
  %v48 = vld [vmem:[%s0] sm:$0xff]
  %v49 = vld [vmem:[%s0 + $0x8] sm:$0xff]
  %v50 = vld [vmem:[%s0 + $0x10] sm:$0xff]
  %v51 = vld [vmem:[%s0 + $0x18] sm:$0xff]
  %v52 = vld [vmem:[%s0 + $0x20] sm:$0xff]
  %v53 = vld [vmem:[%s0 + $0x28] sm:$0xff]
  %v54 = vld [vmem:[%s0 + $0x30] sm:$0xff]
  %v55 = vld [vmem:[%s0 + $0x38] sm:$0xff]
  %v56 = vld [vmem:[%s0 + $0x40] sm:$0xff]
  %v57 = vld [vmem:[%s0 + $0x48] sm:$0xff]
  %v58 = vld [vmem:[%s0 + $0x50] sm:$0xff]
  %v59 = vld [vmem:[%s0 + $0x58] sm:$0xff]
  %v60 = vld [vmem:[%s0 + $0x60] sm:$0xff]
  %v61 = vld [vmem:[%s0 + $0x68] sm:$0xff]
  %v62 = vld [vmem:[%s0 + $0x70] sm:$0xff]
  %v63 = vld [vmem:[%s0 + $0x78] sm:$0xff]
  %v64 = vpack.c.bf16 %v49, %v48
  %v65 = vpack.c.bf16 %v51, %v50
  %v66 = vpack.c.bf16 %v53, %v52
  %v67 = vpack.c.bf16 %v55, %v54
  %v68 = vpack.c.bf16 %v57, %v56
  %v69 = vpack.c.bf16 %v59, %v58
  %v70 = vpack.c.bf16 %v61, %v60
  %v71 = vpack.c.bf16 %v63, %v62
  %v72 = vld [vmem:[%s1] sm:$0xff]
  %v73 = vld [vmem:[%s1 + $0x8] sm:$0xff]
  %v74 = vld [vmem:[%s1 + $0x10] sm:$0xff]
  %v75 = vld [vmem:[%s1 + $0x18] sm:$0xff]
  %v76 = vld [vmem:[%s1 + $0x20] sm:$0xff]
  %v77 = vld [vmem:[%s1 + $0x28] sm:$0xff]
  %v78 = vld [vmem:[%s1 + $0x30] sm:$0xff]
  %v79 = vld [vmem:[%s1 + $0x38] sm:$0xff]
  %v80 = vpack.c.bf16 %v73, %v72
  %v81 = vpack.c.bf16 %v75, %v74
  %v82 = vpack.c.bf16 %v77, %v76
  %v83 = vpack.c.bf16 %v79, %v78
  %v84 = vlaneseq
  %v85 = vshrl.u32 %v84, 7
  %v86 = vsub.s32 0, %v85
  %v87 = vrot.slane %v47, %v86
  %vm88 = vcmask 523264
  %v90 = vsel %vm88, %v64, 0
  %v93 = vsel %vm88, %v65, 0
  %v96 = vsel %vm88, %v66, 0
  %v99 = vsel %vm88, %v67, 0
  %v102 = vsel %vm88, %v68, 0
  %v105 = vsel %vm88, %v69, 0
  %v108 = vsel %vm88, %v70, 0
  %v111 = vsel %vm88, %v71, 0
  %113 = vmatprep.subr.bf16.mxu0 0
  %114 = vmatpush1.bf16.msra.mxu0 %v80
  %115 = vmatprep.subr.bf16.mxu0 0
  %116 = vmatpush1.bf16.msra.mxu0 %v81
  %117 = vmatprep.subr.bf16.mxu0 0
  %118 = vmatpush1.bf16.msra.mxu0 %v82
  %119 = vmatprep.subr.bf16.mxu0 0
  %120 = vmatpush1.bf16.msra.mxu0 %v83
  %121 = vmatprep.subr.bf16.mxu0 0
  %122 = vmatpush1.bf16.msra.mxu0 0
  %123 = vmatprep.subr.bf16.mxu0 0
  %124 = vmatpush1.bf16.msra.mxu0 0
  %125 = vmatprep.subr.bf16.mxu0 0
  %126 = vmatpush1.bf16.msra.mxu0 0
  %127 = vmatprep.subr.bf16.mxu0 0
  %128 = vmatpush1.bf16.msra.mxu0 0
  %129 = vmatprep.subr.bf16.mxu0 0
  %130 = vmatpush1.bf16.msra.mxu0 0
  %131 = vmatprep.subr.bf16.mxu0 0
  %132 = vmatpush1.bf16.msra.mxu0 0
  %133 = vmatprep.subr.bf16.mxu0 0
  %134 = vmatpush1.bf16.msra.mxu0 0
  %135 = vmatprep.subr.bf16.mxu0 0
  %136 = vmatpush1.bf16.msra.mxu0 0
  %137 = vmatprep.subr.bf16.mxu0 0
  %138 = vmatpush1.bf16.msra.mxu0 0
  %139 = vmatprep.subr.bf16.mxu0 0
  %140 = vmatpush1.bf16.msra.mxu0 0
  %141 = vmatprep.subr.bf16.mxu0 0
  %142 = vmatpush1.bf16.msra.mxu0 0
  %143 = vmatprep.subr.bf16.mxu0 0
  %144 = vmatpush1.bf16.msra.mxu0 0
  %145 = vmatprep.mubr.bf16.mxu0 0
  %146 = vmatmul.mubr.bf16.gmra.mrb[0].mxu0 %v90
  %v147 = vpop.f32.mrb[0].mxu0
  %v148 = vadd.f32 %v87, %v147
  %v149 = vpop.f32.mrb[0].mxu0
  %v150 = vpop.f32.mrb[0].mxu0
  %v151 = vadd.f32 %v87, %v150
  %v152 = vpop.f32.mrb[0].mxu0
  %153 = vmatprep.mubr.bf16.mxu0 0
  %154 = vmatmul.mubr.bf16.gmra.mrb[0].mxu0 %v93
  %v155 = vpop.f32.mrb[0].mxu0
  %v156 = vadd.f32 %v87, %v155
  %v157 = vpop.f32.mrb[0].mxu0
  %v158 = vpop.f32.mrb[0].mxu0
  %v159 = vadd.f32 %v87, %v158
  %v160 = vpop.f32.mrb[0].mxu0
  %161 = vmatprep.mubr.bf16.mxu0 0
  %162 = vmatmul.mubr.bf16.gmra.mrb[0].mxu0 %v96
  %v163 = vpop.f32.mrb[0].mxu0
  %v164 = vadd.f32 %v87, %v163
  %v165 = vpop.f32.mrb[0].mxu0
  %v166 = vpop.f32.mrb[0].mxu0
  %v167 = vadd.f32 %v87, %v166
  %v168 = vpop.f32.mrb[0].mxu0
  %169 = vmatprep.mubr.bf16.mxu0 0
  %170 = vmatmul.mubr.bf16.gmra.mrb[0].mxu0 %v99
  %v171 = vpop.f32.mrb[0].mxu0
  %v172 = vadd.f32 %v87, %v171
  %v173 = vpop.f32.mrb[0].mxu0
  %v174 = vpop.f32.mrb[0].mxu0
  %v175 = vadd.f32 %v87, %v174
  %v176 = vpop.f32.mrb[0].mxu0
  %177 = vmatprep.mubr.bf16.mxu0 0
  %178 = vmatmul.mubr.bf16.gmra.mrb[0].mxu0 %v102
  %v179 = vpop.f32.mrb[0].mxu0
  %v180 = vadd.f32 %v87, %v179
  %v181 = vpop.f32.mrb[0].mxu0
  %v182 = vpop.f32.mrb[0].mxu0
  %v183 = vadd.f32 %v87, %v182
  %v184 = vpop.f32.mrb[0].mxu0
  %185 = vmatprep.mubr.bf16.mxu0 0
  %186 = vmatmul.mubr.bf16.gmra.mrb[0].mxu0 %v105
  %v187 = vpop.f32.mrb[0].mxu0
  %v188 = vadd.f32 %v87, %v187
  %v189 = vpop.f32.mrb[0].mxu0
  %v190 = vpop.f32.mrb[0].mxu0
  %v191 = vadd.f32 %v87, %v190
  %v192 = vpop.f32.mrb[0].mxu0
  %193 = vmatprep.mubr.bf16.mxu0 0
  %194 = vmatmul.mubr.bf16.gmra.mrb[0].mxu0 %v108
  %v195 = vpop.f32.mrb[0].mxu0
  %v196 = vadd.f32 %v87, %v195
  %v197 = vpop.f32.mrb[0].mxu0
  %v198 = vpop.f32.mrb[0].mxu0
  %v199 = vadd.f32 %v87, %v198
  %v200 = vpop.f32.mrb[0].mxu0
  %201 = vmatprep.mubr.bf16.mxu0 0
  %202 = vmatmul.mubr.bf16.gmra.mrb[0].mxu0 %v111
  %v203 = vpop.f32.mrb[0].mxu0
  %v204 = vadd.f32 %v87, %v203
  %v205 = vpop.f32.mrb[0].mxu0
  %v206 = vpop.f32.mrb[0].mxu0
  %v207 = vadd.f32 %v87, %v206
  %v208 = vpop.f32.mrb[0].mxu0
  %209 = vdwg.mxu0
  %v210 = vld [vmem:[%s3] sm:$0xff]
  %v211 = vld [vmem:[%s3 + $0x8] sm:$0xff]
  %v212 = vld [vmem:[%s3 + $0x10] sm:$0xff]
  %v213 = vld [vmem:[%s3 + $0x18] sm:$0xff]
  %v214 = vld [vmem:[%s3 + $0x20] sm:$0xff]
  %v215 = vld [vmem:[%s3 + $0x28] sm:$0xff]
  %v216 = vld [vmem:[%s3 + $0x30] sm:$0xff]
  %v217 = vld [vmem:[%s3 + $0x38] sm:$0xff]
  %v218 = vld [vmem:[%s3 + $0x40] sm:$0xff]
  %v219 = vld [vmem:[%s3 + $0x48] sm:$0xff]
  %v220 = vld [vmem:[%s3 + $0x50] sm:$0xff]
  %v221 = vld [vmem:[%s3 + $0x58] sm:$0xff]
  %v222 = vld [vmem:[%s3 + $0x60] sm:$0xff]
  %v223 = vld [vmem:[%s3 + $0x68] sm:$0xff]
  %v224 = vld [vmem:[%s3 + $0x70] sm:$0xff]
  %v225 = vld [vmem:[%s3 + $0x78] sm:$0xff]
  %v226 = vld [vmem:[%s4] sm:$0x3]
  %v227 = vld [vmem:[%s5] sm:$0xff]
  %v228 = vld [vmem:[%s5 + $0x8] sm:$0xff]
  %v229 = vld [vmem:[%s5 + $0x10] sm:$0xff]
  %v230 = vld [vmem:[%s5 + $0x18] sm:$0xff]
  %vm231 = vnez %v227
  %vm232 = vnez %v228
  %vm233 = vnez %v229
  %vm234 = vnez %v230
  %236 = vset.pattern.permute.xlu0 0
  %237 = vperm.xlu0 %236, %v210
  %v238 = vpop.permute.xlu0 %237
  %241 = vset.pattern.permute.xlu0 0
  %242 = vperm.xlu0 %241, %v211
  %v243 = vpop.permute.xlu0 %242
  %246 = vset.pattern.permute.xlu0 0
  %247 = vperm.xlu0 %246, %v212
  %v248 = vpop.permute.xlu0 %247
  %251 = vset.pattern.permute.xlu0 0
  %252 = vperm.xlu0 %251, %v213
  %v253 = vpop.permute.xlu0 %252
  %256 = vset.pattern.permute.xlu0 0
  %257 = vperm.xlu0 %256, %v214
  %v258 = vpop.permute.xlu0 %257
  %261 = vset.pattern.permute.xlu0 0
  %262 = vperm.xlu0 %261, %v215
  %v263 = vpop.permute.xlu0 %262
  %266 = vset.pattern.permute.xlu0 0
  %267 = vperm.xlu0 %266, %v216
  %v268 = vpop.permute.xlu0 %267
  %271 = vset.pattern.permute.xlu0 0
  %272 = vperm.xlu0 %271, %v217
  %v273 = vpop.permute.xlu0 %272
  %276 = vset.pattern.permute.xlu0 0
  %277 = vperm.xlu0 %276, %v218
  %v278 = vpop.permute.xlu0 %277
  %281 = vset.pattern.permute.xlu0 0
  %282 = vperm.xlu0 %281, %v219
  %v283 = vpop.permute.xlu0 %282
  %286 = vset.pattern.permute.xlu0 0
  %287 = vperm.xlu0 %286, %v220
  %v288 = vpop.permute.xlu0 %287
  %291 = vset.pattern.permute.xlu0 0
  %292 = vperm.xlu0 %291, %v221
  %v293 = vpop.permute.xlu0 %292
  %296 = vset.pattern.permute.xlu0 0
  %297 = vperm.xlu0 %296, %v222
  %v298 = vpop.permute.xlu0 %297
  %301 = vset.pattern.permute.xlu0 0
  %302 = vperm.xlu0 %301, %v223
  %v303 = vpop.permute.xlu0 %302
  %306 = vset.pattern.permute.xlu0 0
  %307 = vperm.xlu0 %306, %v224
  %v308 = vpop.permute.xlu0 %307
  %311 = vset.pattern.permute.xlu0 0
  %312 = vperm.xlu0 %311, %v225
  %v313 = vpop.permute.xlu0 %312
  %v315 = vlaneseq
  %v316 = vshrl.u32 %v315, 7
  %v317 = vsub.s32 0, %v316
  %v318 = vrot.slane %v226, %v317
  %v319 = vadd.f32 %v238, %v318
  %v320 = vadd.f32 %v243, %v318
  %v321 = vadd.f32 %v248, %v318
  %v322 = vadd.f32 %v253, %v318
  %v323 = vadd.f32 %v258, %v318
  %v324 = vadd.f32 %v263, %v318
  %v325 = vadd.f32 %v268, %v318
  %v326 = vadd.f32 %v273, %v318
  %v327 = vadd.f32 %v278, %v318
  %v328 = vadd.f32 %v283, %v318
  %v329 = vadd.f32 %v288, %v318
  %v330 = vadd.f32 %v293, %v318
  %v331 = vadd.f32 %v298, %v318
  %v332 = vadd.f32 %v303, %v318
  %v333 = vadd.f32 %v308, %v318
  %v334 = vadd.f32 %v313, %v318
  %vm335 = vcmp.ge.f32.partialorder %v319, 0.0
  %vm336 = vcmp.ge.f32.partialorder %v320, 0.0
  %vm337 = vcmp.ge.f32.partialorder %v321, 0.0
  %vm338 = vcmp.ge.f32.partialorder %v322, 0.0
  %vm339 = vcmp.ge.f32.partialorder %v323, 0.0
  %vm340 = vcmp.ge.f32.partialorder %v324, 0.0
  %vm341 = vcmp.ge.f32.partialorder %v325, 0.0
  %vm342 = vcmp.ge.f32.partialorder %v326, 0.0
  %vm343 = vcmp.ge.f32.partialorder %v327, 0.0
  %vm344 = vcmp.ge.f32.partialorder %v328, 0.0
  %vm345 = vcmp.ge.f32.partialorder %v329, 0.0
  %vm346 = vcmp.ge.f32.partialorder %v330, 0.0
  %vm347 = vcmp.ge.f32.partialorder %v331, 0.0
  %vm348 = vcmp.ge.f32.partialorder %v332, 0.0
  %vm349 = vcmp.ge.f32.partialorder %v333, 0.0
  %vm350 = vcmp.ge.f32.partialorder %v334, 0.0
  %v351 = vmul.f32 %v319, 0.2
  %v352 = vmul.f32 %v320, 0.2
  %v353 = vmul.f32 %v321, 0.2
  %v354 = vmul.f32 %v322, 0.2
  %v355 = vmul.f32 %v323, 0.2
  %v356 = vmul.f32 %v324, 0.2
  %v357 = vmul.f32 %v325, 0.2
  %v358 = vmul.f32 %v326, 0.2
  %v359 = vmul.f32 %v327, 0.2
  %v360 = vmul.f32 %v328, 0.2
  %v361 = vmul.f32 %v329, 0.2
  %v362 = vmul.f32 %v330, 0.2
  %v363 = vmul.f32 %v331, 0.2
  %v364 = vmul.f32 %v332, 0.2
  %v365 = vmul.f32 %v333, 0.2
  %v366 = vmul.f32 %v334, 0.2
  %v367 = vsel %vm335, %v319, %v351
  %v368 = vsel %vm336, %v320, %v352
  %v369 = vsel %vm337, %v321, %v353
  %v370 = vsel %vm338, %v322, %v354
  %v371 = vsel %vm339, %v323, %v355
  %v372 = vsel %vm340, %v324, %v356
  %v373 = vsel %vm341, %v325, %v357
  %v374 = vsel %vm342, %v326, %v358
  %v375 = vsel %vm343, %v327, %v359
  %v376 = vsel %vm344, %v328, %v360
  %v377 = vsel %vm345, %v329, %v361
  %v378 = vsel %vm346, %v330, %v362
  %v379 = vsel %vm347, %v331, %v363
  %v380 = vsel %vm348, %v332, %v364
  %v381 = vsel %vm349, %v333, %v365
  %v382 = vsel %vm350, %v334, %v366
  %v383 = vsub.f32 0.0, %v367
  %v384 = vsub.f32 0.0, %v368
  %v385 = vsub.f32 0.0, %v369
  %v386 = vsub.f32 0.0, %v370
  %v387 = vsub.f32 0.0, %v371
  %v388 = vsub.f32 0.0, %v372
  %v389 = vsub.f32 0.0, %v373
  %v390 = vsub.f32 0.0, %v374
  %v391 = vsub.f32 0.0, %v375
  %v392 = vsub.f32 0.0, %v376
  %v393 = vsub.f32 0.0, %v377
  %v394 = vsub.f32 0.0, %v378
  %v395 = vsub.f32 0.0, %v379
  %v396 = vsub.f32 0.0, %v380
  %v397 = vsub.f32 0.0, %v381
  %v398 = vsub.f32 0.0, %v382
  %v399 = vmul.f32 %v383, 1.442695
  %v400 = vpow.pop %v399
  %v401 = vmul.f32 %v384, 1.442695
  %v402 = vpow.pop %v401
  %v403 = vmul.f32 %v385, 1.442695
  %v404 = vpow.pop %v403
  %v405 = vmul.f32 %v386, 1.442695
  %v406 = vpow.pop %v405
  %v407 = vmul.f32 %v387, 1.442695
  %v408 = vpow.pop %v407
  %v409 = vmul.f32 %v388, 1.442695
  %v410 = vpow.pop %v409
  %v411 = vmul.f32 %v389, 1.442695
  %v412 = vpow.pop %v411
  %v413 = vmul.f32 %v390, 1.442695
  %v414 = vpow.pop %v413
  %v415 = vmul.f32 %v391, 1.442695
  %v416 = vpow.pop %v415
  %v417 = vmul.f32 %v392, 1.442695
  %v418 = vpow.pop %v417
  %v419 = vmul.f32 %v393, 1.442695
  %v420 = vpow.pop %v419
  %v421 = vmul.f32 %v394, 1.442695
  %v422 = vpow.pop %v421
  %v423 = vmul.f32 %v395, 1.442695
  %v424 = vpow.pop %v423
  %v425 = vmul.f32 %v396, 1.442695
  %v426 = vpow.pop %v425
  %v427 = vmul.f32 %v397, 1.442695
  %v428 = vpow.pop %v427
  %v429 = vmul.f32 %v398, 1.442695
  %v430 = vpow.pop %v429
  %v431 = vsel %vm231, 16843009, 0
  %v432 = vsel %vm232, 16843009, 0
  %v433 = vsel %vm233, 16843009, 0
  %v434 = vsel %vm234, 16843009, 0
  %v435 = vunpack.c.0.s8 %v431
  %v436 = vunpack.c.1.s8 %v431
  %v437 = vunpack.c.2.s8 %v431
  %v438 = vunpack.c.3.s8 %v431
  %v439 = vunpack.c.0.s8 %v432
  %v440 = vunpack.c.1.s8 %v432
  %v441 = vunpack.c.2.s8 %v432
  %v442 = vunpack.c.3.s8 %v432
  %v443 = vunpack.c.0.s8 %v433
  %v444 = vunpack.c.1.s8 %v433
  %v445 = vunpack.c.2.s8 %v433
  %v446 = vunpack.c.3.s8 %v433
  %v447 = vunpack.c.0.s8 %v434
  %v448 = vunpack.c.1.s8 %v434
  %v449 = vunpack.c.2.s8 %v434
  %v450 = vunpack.c.3.s8 %v434
  %v451 = vpack.c.b16 %v435, %v435
  %v452 = vpack.c.b8 %v451, %v451
  %v453 = vpack.c.b16 %v436, %v436
  %v454 = vpack.c.b8 %v453, %v453
  %v455 = vpack.c.b16 %v437, %v437
  %v456 = vpack.c.b8 %v455, %v455
  %v457 = vpack.c.b16 %v438, %v438
  %v458 = vpack.c.b8 %v457, %v457
  %v459 = vpack.c.b16 %v439, %v439
  %v460 = vpack.c.b8 %v459, %v459
  %v461 = vpack.c.b16 %v440, %v440
  %v462 = vpack.c.b8 %v461, %v461
  %v463 = vpack.c.b16 %v441, %v441
  %v464 = vpack.c.b8 %v463, %v463
  %v465 = vpack.c.b16 %v442, %v442
  %v466 = vpack.c.b8 %v465, %v465
  %v467 = vpack.c.b16 %v443, %v443
  %v468 = vpack.c.b8 %v467, %v467
  %v469 = vpack.c.b16 %v444, %v444
  %v470 = vpack.c.b8 %v469, %v469
  %v471 = vpack.c.b16 %v445, %v445
  %v472 = vpack.c.b8 %v471, %v471
  %v473 = vpack.c.b16 %v446, %v446
  %v474 = vpack.c.b8 %v473, %v473
  %v475 = vpack.c.b16 %v447, %v447
  %v476 = vpack.c.b8 %v475, %v475
  %v477 = vpack.c.b16 %v448, %v448
  %v478 = vpack.c.b8 %v477, %v477
  %v479 = vpack.c.b16 %v449, %v449
  %v480 = vpack.c.b8 %v479, %v479
  %v481 = vpack.c.b16 %v450, %v450
  %v482 = vpack.c.b8 %v481, %v481
  %vm483 = vnez %v452
  %vm484 = vnez %v454
  %vm485 = vnez %v456
  %vm486 = vnez %v458
  %vm487 = vnez %v460
  %vm488 = vnez %v462
  %vm489 = vnez %v464
  %vm490 = vnez %v466
  %vm491 = vnez %v468
  %vm492 = vnez %v470
  %vm493 = vnez %v472
  %vm494 = vnez %v474
  %vm495 = vnez %v476
  %vm496 = vnez %v478
  %vm497 = vnez %v480
  %vm498 = vnez %v482
  %v499 = vsel %vm483, 16843009, 0
  %v500 = vsel %vm484, 16843009, 0
  %v501 = vsel %vm485, 16843009, 0
  %v502 = vsel %vm486, 16843009, 0
  %v503 = vsel %vm487, 16843009, 0
  %v504 = vsel %vm488, 16843009, 0
  %v505 = vsel %vm489, 16843009, 0
  %v506 = vsel %vm490, 16843009, 0
  %v507 = vsel %vm491, 16843009, 0
  %v508 = vsel %vm492, 16843009, 0
  %v509 = vsel %vm493, 16843009, 0
  %v510 = vsel %vm494, 16843009, 0
  %v511 = vsel %vm495, 16843009, 0
  %v512 = vsel %vm496, 16843009, 0
  %v513 = vsel %vm497, 16843009, 0
  %v514 = vsel %vm498, 16843009, 0
  %v515 = vunpack.c.0.s8 %v499
  %v516 = vunpack.c.0.s8 %v500
  %v517 = vunpack.c.0.s8 %v501
  %v518 = vunpack.c.0.s8 %v502
  %v519 = vunpack.c.0.s8 %v503
  %v520 = vunpack.c.0.s8 %v504
  %v521 = vunpack.c.0.s8 %v505
  %v522 = vunpack.c.0.s8 %v506
  %v523 = vunpack.c.0.s8 %v507
  %v524 = vunpack.c.0.s8 %v508
  %v525 = vunpack.c.0.s8 %v509
  %v526 = vunpack.c.0.s8 %v510
  %v527 = vunpack.c.0.s8 %v511
  %v528 = vunpack.c.0.s8 %v512
  %v529 = vunpack.c.0.s8 %v513
  %v530 = vunpack.c.0.s8 %v514
  %vm531 = vcmp.ne.s32.totalorder %v515, 0
  %vm532 = vcmp.ne.s32.totalorder %v516, 0
  %vm533 = vcmp.ne.s32.totalorder %v517, 0
  %vm534 = vcmp.ne.s32.totalorder %v518, 0
  %vm535 = vcmp.ne.s32.totalorder %v519, 0
  %vm536 = vcmp.ne.s32.totalorder %v520, 0
  %vm537 = vcmp.ne.s32.totalorder %v521, 0
  %vm538 = vcmp.ne.s32.totalorder %v522, 0
  %vm539 = vcmp.ne.s32.totalorder %v523, 0
  %vm540 = vcmp.ne.s32.totalorder %v524, 0
  %vm541 = vcmp.ne.s32.totalorder %v525, 0
  %vm542 = vcmp.ne.s32.totalorder %v526, 0
  %vm543 = vcmp.ne.s32.totalorder %v527, 0
  %vm544 = vcmp.ne.s32.totalorder %v528, 0
  %vm545 = vcmp.ne.s32.totalorder %v529, 0
  %vm546 = vcmp.ne.s32.totalorder %v530, 0
  %v547 = vsel %vm531, %v400, 0.0
  %v548 = vsel %vm532, %v402, 0.0
  %v549 = vsel %vm533, %v404, 0.0
  %v550 = vsel %vm534, %v406, 0.0
  %v551 = vsel %vm535, %v408, 0.0
  %v552 = vsel %vm536, %v410, 0.0
  %v553 = vsel %vm537, %v412, 0.0
  %v554 = vsel %vm538, %v414, 0.0
  %v555 = vsel %vm539, %v416, 0.0
  %v556 = vsel %vm540, %v418, 0.0
  %v557 = vsel %vm541, %v420, 0.0
  %v558 = vsel %vm542, %v422, 0.0
  %v559 = vsel %vm543, %v424, 0.0
  %v560 = vsel %vm544, %v426, 0.0
  %v561 = vsel %vm545, %v428, 0.0
  %v562 = vsel %vm546, %v430, 0.0
  %v563 = vpack.c.bf16 %v548, %v547
  %v564 = vpack.c.bf16 %v550, %v549
  %v565 = vpack.c.bf16 %v552, %v551
  %v566 = vpack.c.bf16 %v554, %v553
  %v567 = vpack.c.bf16 %v556, %v555
  %v568 = vpack.c.bf16 %v558, %v557
  %v569 = vpack.c.bf16 %v560, %v559
  %v570 = vpack.c.bf16 %v562, %v561
  %v571 = vpack.c.bf16 %v151, %v148
  %v572 = vpack.c.bf16 %v159, %v156
  %v573 = vpack.c.bf16 %v167, %v164
  %v574 = vpack.c.bf16 %v175, %v172
  %v575 = vpack.c.bf16 %v183, %v180
  %v576 = vpack.c.bf16 %v191, %v188
  %v577 = vpack.c.bf16 %v199, %v196
  %v578 = vpack.c.bf16 %v207, %v204
  %579 = vmatprep.subr.bf16.mxu0 0
  %580 = vmatpush1.bf16.msra.mxu0 %v571
  %581 = vmatprep.subr.bf16.mxu0 0
  %582 = vmatpush1.bf16.msra.mxu0 %v572
  %583 = vmatprep.subr.bf16.mxu0 0
  %584 = vmatpush1.bf16.msra.mxu0 %v573
  %585 = vmatprep.subr.bf16.mxu0 0
  %586 = vmatpush1.bf16.msra.mxu0 %v574
  %587 = vmatprep.subr.bf16.mxu0 0
  %588 = vmatpush1.bf16.msra.mxu0 %v575
  %589 = vmatprep.subr.bf16.mxu0 0
  %590 = vmatpush1.bf16.msra.mxu0 %v576
  %591 = vmatprep.subr.bf16.mxu0 0
  %592 = vmatpush1.bf16.msra.mxu0 %v577
  %593 = vmatprep.subr.bf16.mxu0 0
  %594 = vmatpush1.bf16.msra.mxu0 %v578
  %595 = vmatprep.subr.bf16.mxu0 0
  %596 = vmatpush1.bf16.msra.mxu0 0
  %597 = vmatprep.subr.bf16.mxu0 0
  %598 = vmatpush1.bf16.msra.mxu0 0
  %599 = vmatprep.subr.bf16.mxu0 0
  %600 = vmatpush1.bf16.msra.mxu0 0
  %601 = vmatprep.subr.bf16.mxu0 0
  %602 = vmatpush1.bf16.msra.mxu0 0
  %603 = vmatprep.subr.bf16.mxu0 0
  %604 = vmatpush1.bf16.msra.mxu0 0
  %605 = vmatprep.subr.bf16.mxu0 0
  %606 = vmatpush1.bf16.msra.mxu0 0
  %607 = vmatprep.subr.bf16.mxu0 0
  %608 = vmatpush1.bf16.msra.mxu0 0
  %609 = vmatprep.subr.bf16.mxu0 0
  %610 = vmatpush1.bf16.msra.mxu0 0
  %611 = vmatprep.mubr.bf16.mxu0 0
  %612 = vmatmul.mubr.bf16.gmra.mrb[0].mxu0 %v563
  %v613 = vpop.f32.mrb[0].mxu0
  %v614 = vadd.f32 0.0, %v613
  %v615 = vpop.f32.mrb[0].mxu0
  %v616 = vpop.f32.mrb[0].mxu0
  %v617 = vadd.f32 0.0, %v616
  %v618 = vpop.f32.mrb[0].mxu0
  %619 = vmatprep.mubr.bf16.mxu0 0
  %620 = vmatmul.mubr.bf16.gmra.mrb[0].mxu0 %v564
  %v621 = vpop.f32.mrb[0].mxu0
  %v622 = vadd.f32 0.0, %v621
  %v623 = vpop.f32.mrb[0].mxu0
  %v624 = vpop.f32.mrb[0].mxu0
  %v625 = vadd.f32 0.0, %v624
  %v626 = vpop.f32.mrb[0].mxu0
  %627 = vmatprep.mubr.bf16.mxu0 0
  %628 = vmatmul.mubr.bf16.gmra.mrb[0].mxu0 %v565
  %v629 = vpop.f32.mrb[0].mxu0
  %v630 = vadd.f32 0.0, %v629
  %v631 = vpop.f32.mrb[0].mxu0
  %v632 = vpop.f32.mrb[0].mxu0
  %v633 = vadd.f32 0.0, %v632
  %v634 = vpop.f32.mrb[0].mxu0
  %635 = vmatprep.mubr.bf16.mxu0 0
  %636 = vmatmul.mubr.bf16.gmra.mrb[0].mxu0 %v566
  %v637 = vpop.f32.mrb[0].mxu0
  %v638 = vadd.f32 0.0, %v637
  %v639 = vpop.f32.mrb[0].mxu0
  %v640 = vpop.f32.mrb[0].mxu0
  %v641 = vadd.f32 0.0, %v640
  %v642 = vpop.f32.mrb[0].mxu0
  %643 = vmatprep.mubr.bf16.mxu0 0
  %644 = vmatmul.mubr.bf16.gmra.mrb[0].mxu0 %v567
  %v645 = vpop.f32.mrb[0].mxu0
  %v646 = vadd.f32 0.0, %v645
  %v647 = vpop.f32.mrb[0].mxu0
  %v648 = vpop.f32.mrb[0].mxu0
  %v649 = vadd.f32 0.0, %v648
  %v650 = vpop.f32.mrb[0].mxu0
  %651 = vmatprep.mubr.bf16.mxu0 0
  %652 = vmatmul.mubr.bf16.gmra.mrb[0].mxu0 %v568
  %v653 = vpop.f32.mrb[0].mxu0
  %v654 = vadd.f32 0.0, %v653
  %v655 = vpop.f32.mrb[0].mxu0
  %v656 = vpop.f32.mrb[0].mxu0
  %v657 = vadd.f32 0.0, %v656
  %v658 = vpop.f32.mrb[0].mxu0
  %659 = vmatprep.mubr.bf16.mxu0 0
  %660 = vmatmul.mubr.bf16.gmra.mrb[0].mxu0 %v569
  %v661 = vpop.f32.mrb[0].mxu0
  %v662 = vadd.f32 0.0, %v661
  %v663 = vpop.f32.mrb[0].mxu0
  %v664 = vpop.f32.mrb[0].mxu0
  %v665 = vadd.f32 0.0, %v664
  %v666 = vpop.f32.mrb[0].mxu0
  %667 = vmatprep.mubr.bf16.mxu0 0
  %668 = vmatmul.mubr.bf16.gmra.mrb[0].mxu0 %v570
  %v669 = vpop.f32.mrb[0].mxu0
  %v670 = vadd.f32 0.0, %v669
  %v671 = vpop.f32.mrb[0].mxu0
  %v672 = vpop.f32.mrb[0].mxu0
  %v673 = vadd.f32 0.0, %v672
  %v674 = vpop.f32.mrb[0].mxu0
  %675 = vdwg.mxu0
  %676 = vset.pattern.permute.xlu0 1
  %677 = vperm.xlu0 %676, %v210
  %v678 = vpop.permute.xlu0 %677
  %680 = vset.pattern.permute.xlu0 1
  %681 = vperm.xlu0 %680, %v211
  %v682 = vpop.permute.xlu0 %681
  %684 = vset.pattern.permute.xlu0 1
  %685 = vperm.xlu0 %684, %v212
  %v686 = vpop.permute.xlu0 %685
  %688 = vset.pattern.permute.xlu0 1
  %689 = vperm.xlu0 %688, %v213
  %v690 = vpop.permute.xlu0 %689
  %692 = vset.pattern.permute.xlu0 1
  %693 = vperm.xlu0 %692, %v214
  %v694 = vpop.permute.xlu0 %693
  %696 = vset.pattern.permute.xlu0 1
  %697 = vperm.xlu0 %696, %v215
  %v698 = vpop.permute.xlu0 %697
  %700 = vset.pattern.permute.xlu0 1
  %701 = vperm.xlu0 %700, %v216
  %v702 = vpop.permute.xlu0 %701
  %704 = vset.pattern.permute.xlu0 1
  %705 = vperm.xlu0 %704, %v217
  %v706 = vpop.permute.xlu0 %705
  %708 = vset.pattern.permute.xlu0 1
  %709 = vperm.xlu0 %708, %v218
  %v710 = vpop.permute.xlu0 %709
  %712 = vset.pattern.permute.xlu0 1
  %713 = vperm.xlu0 %712, %v219
  %v714 = vpop.permute.xlu0 %713
  %716 = vset.pattern.permute.xlu0 1
  %717 = vperm.xlu0 %716, %v220
  %v718 = vpop.permute.xlu0 %717
  %720 = vset.pattern.permute.xlu0 1
  %721 = vperm.xlu0 %720, %v221
  %v722 = vpop.permute.xlu0 %721
  %724 = vset.pattern.permute.xlu0 1
  %725 = vperm.xlu0 %724, %v222
  %v726 = vpop.permute.xlu0 %725
  %728 = vset.pattern.permute.xlu0 1
  %729 = vperm.xlu0 %728, %v223
  %v730 = vpop.permute.xlu0 %729
  %732 = vset.pattern.permute.xlu0 1
  %733 = vperm.xlu0 %732, %v224
  %v734 = vpop.permute.xlu0 %733
  %736 = vset.pattern.permute.xlu0 1
  %737 = vperm.xlu0 %736, %v225
  %v738 = vpop.permute.xlu0 %737
  %v740 = vlaneseq
  %v741 = vshrl.u32 %v740, 7
  %v742 = vsub.s32 1, %v741
  %v743 = vrot.slane %v226, %v742
  %v744 = vadd.f32 %v678, %v743
  %v745 = vadd.f32 %v682, %v743
  %v746 = vadd.f32 %v686, %v743
  %v747 = vadd.f32 %v690, %v743
  %v748 = vadd.f32 %v694, %v743
  %v749 = vadd.f32 %v698, %v743
  %v750 = vadd.f32 %v702, %v743
  %v751 = vadd.f32 %v706, %v743
  %v752 = vadd.f32 %v710, %v743
  %v753 = vadd.f32 %v714, %v743
  %v754 = vadd.f32 %v718, %v743
  %v755 = vadd.f32 %v722, %v743
  %v756 = vadd.f32 %v726, %v743
  %v757 = vadd.f32 %v730, %v743
  %v758 = vadd.f32 %v734, %v743
  %v759 = vadd.f32 %v738, %v743
  %vm760 = vcmp.ge.f32.partialorder %v744, 0.0
  %vm761 = vcmp.ge.f32.partialorder %v745, 0.0
  %vm762 = vcmp.ge.f32.partialorder %v746, 0.0
  %vm763 = vcmp.ge.f32.partialorder %v747, 0.0
  %vm764 = vcmp.ge.f32.partialorder %v748, 0.0
  %vm765 = vcmp.ge.f32.partialorder %v749, 0.0
  %vm766 = vcmp.ge.f32.partialorder %v750, 0.0
  %vm767 = vcmp.ge.f32.partialorder %v751, 0.0
  %vm768 = vcmp.ge.f32.partialorder %v752, 0.0
  %vm769 = vcmp.ge.f32.partialorder %v753, 0.0
  %vm770 = vcmp.ge.f32.partialorder %v754, 0.0
  %vm771 = vcmp.ge.f32.partialorder %v755, 0.0
  %vm772 = vcmp.ge.f32.partialorder %v756, 0.0
  %vm773 = vcmp.ge.f32.partialorder %v757, 0.0
  %vm774 = vcmp.ge.f32.partialorder %v758, 0.0
  %vm775 = vcmp.ge.f32.partialorder %v759, 0.0
  %v776 = vmul.f32 %v744, 0.2
  %v777 = vmul.f32 %v745, 0.2
  %v778 = vmul.f32 %v746, 0.2
  %v779 = vmul.f32 %v747, 0.2
  %v780 = vmul.f32 %v748, 0.2
  %v781 = vmul.f32 %v749, 0.2
  %v782 = vmul.f32 %v750, 0.2
  %v783 = vmul.f32 %v751, 0.2
  %v784 = vmul.f32 %v752, 0.2
  %v785 = vmul.f32 %v753, 0.2
  %v786 = vmul.f32 %v754, 0.2
  %v787 = vmul.f32 %v755, 0.2
  %v788 = vmul.f32 %v756, 0.2
  %v789 = vmul.f32 %v757, 0.2
  %v790 = vmul.f32 %v758, 0.2
  %v791 = vmul.f32 %v759, 0.2
  %v792 = vsel %vm760, %v744, %v776
  %v793 = vsel %vm761, %v745, %v777
  %v794 = vsel %vm762, %v746, %v778
  %v795 = vsel %vm763, %v747, %v779
  %v796 = vsel %vm764, %v748, %v780
  %v797 = vsel %vm765, %v749, %v781
  %v798 = vsel %vm766, %v750, %v782
  %v799 = vsel %vm767, %v751, %v783
  %v800 = vsel %vm768, %v752, %v784
  %v801 = vsel %vm769, %v753, %v785
  %v802 = vsel %vm770, %v754, %v786
  %v803 = vsel %vm771, %v755, %v787
  %v804 = vsel %vm772, %v756, %v788
  %v805 = vsel %vm773, %v757, %v789
  %v806 = vsel %vm774, %v758, %v790
  %v807 = vsel %vm775, %v759, %v791
  %v808 = vsub.f32 0.0, %v792
  %v809 = vsub.f32 0.0, %v793
  %v810 = vsub.f32 0.0, %v794
  %v811 = vsub.f32 0.0, %v795
  %v812 = vsub.f32 0.0, %v796
  %v813 = vsub.f32 0.0, %v797
  %v814 = vsub.f32 0.0, %v798
  %v815 = vsub.f32 0.0, %v799
  %v816 = vsub.f32 0.0, %v800
  %v817 = vsub.f32 0.0, %v801
  %v818 = vsub.f32 0.0, %v802
  %v819 = vsub.f32 0.0, %v803
  %v820 = vsub.f32 0.0, %v804
  %v821 = vsub.f32 0.0, %v805
  %v822 = vsub.f32 0.0, %v806
  %v823 = vsub.f32 0.0, %v807
  %v824 = vmul.f32 %v808, 1.442695
  %v825 = vpow.pop %v824
  %v826 = vmul.f32 %v809, 1.442695
  %v827 = vpow.pop %v826
  %v828 = vmul.f32 %v810, 1.442695
  %v829 = vpow.pop %v828
  %v830 = vmul.f32 %v811, 1.442695
  %v831 = vpow.pop %v830
  %v832 = vmul.f32 %v812, 1.442695
  %v833 = vpow.pop %v832
  %v834 = vmul.f32 %v813, 1.442695
  %v835 = vpow.pop %v834
  %v836 = vmul.f32 %v814, 1.442695
  %v837 = vpow.pop %v836
  %v838 = vmul.f32 %v815, 1.442695
  %v839 = vpow.pop %v838
  %v840 = vmul.f32 %v816, 1.442695
  %v841 = vpow.pop %v840
  %v842 = vmul.f32 %v817, 1.442695
  %v843 = vpow.pop %v842
  %v844 = vmul.f32 %v818, 1.442695
  %v845 = vpow.pop %v844
  %v846 = vmul.f32 %v819, 1.442695
  %v847 = vpow.pop %v846
  %v848 = vmul.f32 %v820, 1.442695
  %v849 = vpow.pop %v848
  %v850 = vmul.f32 %v821, 1.442695
  %v851 = vpow.pop %v850
  %v852 = vmul.f32 %v822, 1.442695
  %v853 = vpow.pop %v852
  %v854 = vmul.f32 %v823, 1.442695
  %v855 = vpow.pop %v854
  %v856 = vsel %vm531, %v825, 0.0
  %v857 = vsel %vm532, %v827, 0.0
  %v858 = vsel %vm533, %v829, 0.0
  %v859 = vsel %vm534, %v831, 0.0
  %v860 = vsel %vm535, %v833, 0.0
  %v861 = vsel %vm536, %v835, 0.0
  %v862 = vsel %vm537, %v837, 0.0
  %v863 = vsel %vm538, %v839, 0.0
  %v864 = vsel %vm539, %v841, 0.0
  %v865 = vsel %vm540, %v843, 0.0
  %v866 = vsel %vm541, %v845, 0.0
  %v867 = vsel %vm542, %v847, 0.0
  %v868 = vsel %vm543, %v849, 0.0
  %v869 = vsel %vm544, %v851, 0.0
  %v870 = vsel %vm545, %v853, 0.0
  %v871 = vsel %vm546, %v855, 0.0
  %v872 = vpack.c.bf16 %v857, %v856
  %v873 = vpack.c.bf16 %v859, %v858
  %v874 = vpack.c.bf16 %v861, %v860
  %v875 = vpack.c.bf16 %v863, %v862
  %v876 = vpack.c.bf16 %v865, %v864
  %v877 = vpack.c.bf16 %v867, %v866
  %v878 = vpack.c.bf16 %v869, %v868
  %v879 = vpack.c.bf16 %v871, %v870
  %888 = vrot.lane.b32.xlu0 %v571, 96
  %v889 = vpop.permute.xlu0 %888
  %890 = vrot.lane.b32.xlu0 %v572, 96
  %v891 = vpop.permute.xlu0 %890
  %892 = vrot.lane.b32.xlu0 %v573, 96
  %v893 = vpop.permute.xlu0 %892
  %894 = vrot.lane.b32.xlu0 %v574, 96
  %v895 = vpop.permute.xlu0 %894
  %896 = vrot.lane.b32.xlu0 %v575, 96
  %v897 = vpop.permute.xlu0 %896
  %898 = vrot.lane.b32.xlu0 %v576, 96
  %v899 = vpop.permute.xlu0 %898
  %900 = vrot.lane.b32.xlu0 %v577, 96
  %v901 = vpop.permute.xlu0 %900
  %902 = vrot.lane.b32.xlu0 %v578, 96
  %v903 = vpop.permute.xlu0 %902
  %912 = vmatprep.subr.bf16.mxu0 0
  %913 = vmatpush1.bf16.msra.mxu0 %v889
  %914 = vmatprep.subr.bf16.mxu0 0
  %915 = vmatpush1.bf16.msra.mxu0 %v891
  %916 = vmatprep.subr.bf16.mxu0 0
  %917 = vmatpush1.bf16.msra.mxu0 %v893
  %918 = vmatprep.subr.bf16.mxu0 0
  %919 = vmatpush1.bf16.msra.mxu0 %v895
  %920 = vmatprep.subr.bf16.mxu0 0
  %921 = vmatpush1.bf16.msra.mxu0 %v897
  %922 = vmatprep.subr.bf16.mxu0 0
  %923 = vmatpush1.bf16.msra.mxu0 %v899
  %924 = vmatprep.subr.bf16.mxu0 0
  %925 = vmatpush1.bf16.msra.mxu0 %v901
  %926 = vmatprep.subr.bf16.mxu0 0
  %927 = vmatpush1.bf16.msra.mxu0 %v903
  %928 = vmatprep.subr.bf16.mxu0 0
  %929 = vmatpush1.bf16.msra.mxu0 0
  %930 = vmatprep.subr.bf16.mxu0 0
  %931 = vmatpush1.bf16.msra.mxu0 0
  %932 = vmatprep.subr.bf16.mxu0 0
  %933 = vmatpush1.bf16.msra.mxu0 0
  %934 = vmatprep.subr.bf16.mxu0 0
  %935 = vmatpush1.bf16.msra.mxu0 0
  %936 = vmatprep.subr.bf16.mxu0 0
  %937 = vmatpush1.bf16.msra.mxu0 0
  %938 = vmatprep.subr.bf16.mxu0 0
  %939 = vmatpush1.bf16.msra.mxu0 0
  %940 = vmatprep.subr.bf16.mxu0 0
  %941 = vmatpush1.bf16.msra.mxu0 0
  %942 = vmatprep.subr.bf16.mxu0 0
  %943 = vmatpush1.bf16.msra.mxu0 0
  %944 = vmatprep.mubr.bf16.mxu0 0
  %945 = vmatmul.mubr.bf16.gmra.mrb[0].mxu0 %v872
  %v946 = vpop.f32.mrb[0].mxu0
  %v947 = vadd.f32 0.0, %v946
  %v948 = vpop.f32.mrb[0].mxu0
  %v949 = vpop.f32.mrb[0].mxu0
  %v950 = vadd.f32 0.0, %v949
  %v951 = vpop.f32.mrb[0].mxu0
  %952 = vmatprep.mubr.bf16.mxu0 0
  %953 = vmatmul.mubr.bf16.gmra.mrb[0].mxu0 %v873
  %v954 = vpop.f32.mrb[0].mxu0
  %v955 = vadd.f32 0.0, %v954
  %v956 = vpop.f32.mrb[0].mxu0
  %v957 = vpop.f32.mrb[0].mxu0
  %v958 = vadd.f32 0.0, %v957
  %v959 = vpop.f32.mrb[0].mxu0
  %960 = vmatprep.mubr.bf16.mxu0 0
  %961 = vmatmul.mubr.bf16.gmra.mrb[0].mxu0 %v874
  %v962 = vpop.f32.mrb[0].mxu0
  %v963 = vadd.f32 0.0, %v962
  %v964 = vpop.f32.mrb[0].mxu0
  %v965 = vpop.f32.mrb[0].mxu0
  %v966 = vadd.f32 0.0, %v965
  %v967 = vpop.f32.mrb[0].mxu0
  %968 = vmatprep.mubr.bf16.mxu0 0
  %969 = vmatmul.mubr.bf16.gmra.mrb[0].mxu0 %v875
  %v970 = vpop.f32.mrb[0].mxu0
  %v971 = vadd.f32 0.0, %v970
  %v972 = vpop.f32.mrb[0].mxu0
  %v973 = vpop.f32.mrb[0].mxu0
  %v974 = vadd.f32 0.0, %v973
  %v975 = vpop.f32.mrb[0].mxu0
  %976 = vmatprep.mubr.bf16.mxu0 0
  %977 = vmatmul.mubr.bf16.gmra.mrb[0].mxu0 %v876
  %v978 = vpop.f32.mrb[0].mxu0
  %v979 = vadd.f32 0.0, %v978
  %v980 = vpop.f32.mrb[0].mxu0
  %v981 = vpop.f32.mrb[0].mxu0
  %v982 = vadd.f32 0.0, %v981
  %v983 = vpop.f32.mrb[0].mxu0
  %984 = vmatprep.mubr.bf16.mxu0 0
  %985 = vmatmul.mubr.bf16.gmra.mrb[0].mxu0 %v877
  %v986 = vpop.f32.mrb[0].mxu0
  %v987 = vadd.f32 0.0, %v986
  %v988 = vpop.f32.mrb[0].mxu0
  %v989 = vpop.f32.mrb[0].mxu0
  %v990 = vadd.f32 0.0, %v989
  %v991 = vpop.f32.mrb[0].mxu0
  %992 = vmatprep.mubr.bf16.mxu0 0
  %993 = vmatmul.mubr.bf16.gmra.mrb[0].mxu0 %v878
  %v994 = vpop.f32.mrb[0].mxu0
  %v995 = vadd.f32 0.0, %v994
  %v996 = vpop.f32.mrb[0].mxu0
  %v997 = vpop.f32.mrb[0].mxu0
  %v998 = vadd.f32 0.0, %v997
  %v999 = vpop.f32.mrb[0].mxu0
  %1000 = vmatprep.mubr.bf16.mxu0 0
  %1001 = vmatmul.mubr.bf16.gmra.mrb[0].mxu0 %v879
  %v1002 = vpop.f32.mrb[0].mxu0
  %v1003 = vadd.f32 0.0, %v1002
  %v1004 = vpop.f32.mrb[0].mxu0
  %v1005 = vpop.f32.mrb[0].mxu0
  %v1006 = vadd.f32 0.0, %v1005
  %v1007 = vpop.f32.mrb[0].mxu0
  %1008 = vdwg.mxu0
  %v1009 = vld [vmem:[%s6] sm:$0xff]
  %v1010 = vld [vmem:[%s6 + $0x8] sm:$0xff]
  %v1011 = vld [vmem:[%s6 + $0x10] sm:$0xff]
  %v1012 = vld [vmem:[%s6 + $0x18] sm:$0xff]
  %v1013 = vld [vmem:[%s6 + $0x20] sm:$0xff]
  %v1014 = vld [vmem:[%s6 + $0x28] sm:$0xff]
  %v1015 = vld [vmem:[%s6 + $0x30] sm:$0xff]
  %v1016 = vld [vmem:[%s6 + $0x38] sm:$0xff]
  %v1017 = vld [vmem:[%s6 + $0x40] sm:$0xff]
  %v1018 = vld [vmem:[%s6 + $0x48] sm:$0xff]
  %v1019 = vld [vmem:[%s6 + $0x50] sm:$0xff]
  %v1020 = vld [vmem:[%s6 + $0x58] sm:$0xff]
  %v1021 = vld [vmem:[%s6 + $0x60] sm:$0xff]
  %v1022 = vld [vmem:[%s6 + $0x68] sm:$0xff]
  %v1023 = vld [vmem:[%s6 + $0x70] sm:$0xff]
  %v1024 = vld [vmem:[%s6 + $0x78] sm:$0xff]
  %1041 = vrot.lane.b32.xlu0 %v947, 32
  %v1042 = vpop.permute.xlu0 %1041
  %1043 = vrot.lane.b32.xlu0 %v950, 32
  %v1044 = vpop.permute.xlu0 %1043
  %1045 = vrot.lane.b32.xlu0 %v955, 32
  %v1046 = vpop.permute.xlu0 %1045
  %1047 = vrot.lane.b32.xlu0 %v958, 32
  %v1048 = vpop.permute.xlu0 %1047
  %1049 = vrot.lane.b32.xlu0 %v963, 32
  %v1050 = vpop.permute.xlu0 %1049
  %1051 = vrot.lane.b32.xlu0 %v966, 32
  %v1052 = vpop.permute.xlu0 %1051
  %1053 = vrot.lane.b32.xlu0 %v971, 32
  %v1054 = vpop.permute.xlu0 %1053
  %1055 = vrot.lane.b32.xlu0 %v974, 32
  %v1056 = vpop.permute.xlu0 %1055
  %1057 = vrot.lane.b32.xlu0 %v979, 32
  %v1058 = vpop.permute.xlu0 %1057
  %1059 = vrot.lane.b32.xlu0 %v982, 32
  %v1060 = vpop.permute.xlu0 %1059
  %1061 = vrot.lane.b32.xlu0 %v987, 32
  %v1062 = vpop.permute.xlu0 %1061
  %1063 = vrot.lane.b32.xlu0 %v990, 32
  %v1064 = vpop.permute.xlu0 %1063
  %1065 = vrot.lane.b32.xlu0 %v995, 32
  %v1066 = vpop.permute.xlu0 %1065
  %1067 = vrot.lane.b32.xlu0 %v998, 32
  %v1068 = vpop.permute.xlu0 %1067
  %1069 = vrot.lane.b32.xlu0 %v1003, 32
  %v1070 = vpop.permute.xlu0 %1069
  %1071 = vrot.lane.b32.xlu0 %v1006, 32
  %v1072 = vpop.permute.xlu0 %1071
  %vm1089 = vcmask 261120
  %v1090 = vsel %vm1089, %v614, %v1042
  %v1091 = vsel %vm1089, %v617, %v1044
  %v1092 = vsel %vm1089, %v622, %v1046
  %v1093 = vsel %vm1089, %v625, %v1048
  %v1094 = vsel %vm1089, %v630, %v1050
  %v1095 = vsel %vm1089, %v633, %v1052
  %v1096 = vsel %vm1089, %v638, %v1054
  %v1097 = vsel %vm1089, %v641, %v1056
  %v1098 = vsel %vm1089, %v646, %v1058
  %v1099 = vsel %vm1089, %v649, %v1060
  %v1100 = vsel %vm1089, %v654, %v1062
  %v1101 = vsel %vm1089, %v657, %v1064
  %v1102 = vsel %vm1089, %v662, %v1066
  %v1103 = vsel %vm1089, %v665, %v1068
  %v1104 = vsel %vm1089, %v670, %v1070
  %v1105 = vsel %vm1089, %v673, %v1072
  %v1106 = vadd.f32 %v1009, %v1090
  %v1107 = vadd.f32 %v1010, %v1091
  %v1108 = vadd.f32 %v1011, %v1092
  %v1109 = vadd.f32 %v1012, %v1093
  %v1110 = vadd.f32 %v1013, %v1094
  %v1111 = vadd.f32 %v1014, %v1095
  %v1112 = vadd.f32 %v1015, %v1096
  %v1113 = vadd.f32 %v1016, %v1097
  %v1114 = vadd.f32 %v1017, %v1098
  %v1115 = vadd.f32 %v1018, %v1099
  %v1116 = vadd.f32 %v1019, %v1100
  %v1117 = vadd.f32 %v1020, %v1101
  %v1118 = vadd.f32 %v1021, %v1102
  %v1119 = vadd.f32 %v1022, %v1103
  %v1120 = vadd.f32 %v1023, %v1104
  %v1121 = vadd.f32 %v1024, %v1105
  %1122 = vst.msk [vmem:[%s6] sm:$0xff] %vm88, %v1106
  %1123 = vst.msk [vmem:[%s6 + $0x8] sm:$0xff] %vm88, %v1107
  %1124 = vst.msk [vmem:[%s6 + $0x10] sm:$0xff] %vm88, %v1108
  %1125 = vst.msk [vmem:[%s6 + $0x18] sm:$0xff] %vm88, %v1109
  %1126 = vst.msk [vmem:[%s6 + $0x20] sm:$0xff] %vm88, %v1110
  %1127 = vst.msk [vmem:[%s6 + $0x28] sm:$0xff] %vm88, %v1111
  %1128 = vst.msk [vmem:[%s6 + $0x30] sm:$0xff] %vm88, %v1112
  %1129 = vst.msk [vmem:[%s6 + $0x38] sm:$0xff] %vm88, %v1113
  %1130 = vst.msk [vmem:[%s6 + $0x40] sm:$0xff] %vm88, %v1114
  %1131 = vst.msk [vmem:[%s6 + $0x48] sm:$0xff] %vm88, %v1115
  %1132 = vst.msk [vmem:[%s6 + $0x50] sm:$0xff] %vm88, %v1116
  %1133 = vst.msk [vmem:[%s6 + $0x58] sm:$0xff] %vm88, %v1117
  %1134 = vst.msk [vmem:[%s6 + $0x60] sm:$0xff] %vm88, %v1118
  %1135 = vst.msk [vmem:[%s6 + $0x68] sm:$0xff] %vm88, %v1119
  %1136 = vst.msk [vmem:[%s6 + $0x70] sm:$0xff] %vm88, %v1120
  %1137 = vst.msk [vmem:[%s6 + $0x78] sm:$0xff] %vm88, %v1121
  // Predicated region
  $region30: #{tpu_custom_call.1} parent=0 // pred_check
    %p1138 = pneg %p26
  $region31: #{tpu_custom_call.1} parent=0 // pred_check_branch
    %1140 = sbr.rel (%p1138) target = $region33
  $region32: #{tpu_custom_call.1} parent=0 // pred_region
    %v1141 = vld [vmem:[%s6] sm:$0xff]
    %v1142 = vld [vmem:[%s6 + $0x8] sm:$0xff]
    %v1143 = vld [vmem:[%s6 + $0x10] sm:$0xff]
    %v1144 = vld [vmem:[%s6 + $0x18] sm:$0xff]
    %v1145 = vld [vmem:[%s6 + $0x20] sm:$0xff]
    %v1146 = vld [vmem:[%s6 + $0x28] sm:$0xff]
    %v1147 = vld [vmem:[%s6 + $0x30] sm:$0xff]
    %v1148 = vld [vmem:[%s6 + $0x38] sm:$0xff]
    %v1149 = vld [vmem:[%s6 + $0x40] sm:$0xff]
    %v1150 = vld [vmem:[%s6 + $0x48] sm:$0xff]
    %v1151 = vld [vmem:[%s6 + $0x50] sm:$0xff]
    %v1152 = vld [vmem:[%s6 + $0x58] sm:$0xff]
    %v1153 = vld [vmem:[%s6 + $0x60] sm:$0xff]
    %v1154 = vld [vmem:[%s6 + $0x68] sm:$0xff]
    %v1155 = vld [vmem:[%s6 + $0x70] sm:$0xff]
    %v1156 = vld [vmem:[%s6 + $0x78] sm:$0xff]
    %v1157 = vsel %vm1089, %v1141, 0.0
    %1158 = vadd.xlane.f32.xlu0 %v1157
    %v1159 = vpop.xlane.xlu0 %1158
    %v1160 = vsel %vm1089, %v1142, 0.0
    %1161 = vadd.xlane.f32.xlu0 %v1160
    %v1162 = vpop.xlane.xlu0 %1161
    %v1163 = vsel %vm1089, %v1143, 0.0
    %1164 = vadd.xlane.f32.xlu0 %v1163
    %v1165 = vpop.xlane.xlu0 %1164
    %v1166 = vsel %vm1089, %v1144, 0.0
    %1167 = vadd.xlane.f32.xlu0 %v1166
    %v1168 = vpop.xlane.xlu0 %1167
    %v1169 = vsel %vm1089, %v1145, 0.0
    %1170 = vadd.xlane.f32.xlu0 %v1169
    %v1171 = vpop.xlane.xlu0 %1170
    %v1172 = vsel %vm1089, %v1146, 0.0
    %1173 = vadd.xlane.f32.xlu0 %v1172
    %v1174 = vpop.xlane.xlu0 %1173
    %v1175 = vsel %vm1089, %v1147, 0.0
    %1176 = vadd.xlane.f32.xlu0 %v1175
    %v1177 = vpop.xlane.xlu0 %1176
    %v1178 = vsel %vm1089, %v1148, 0.0
    %1179 = vadd.xlane.f32.xlu0 %v1178
    %v1180 = vpop.xlane.xlu0 %1179
    %v1181 = vsel %vm1089, %v1149, 0.0
    %1182 = vadd.xlane.f32.xlu0 %v1181
    %v1183 = vpop.xlane.xlu0 %1182
    %v1184 = vsel %vm1089, %v1150, 0.0
    %1185 = vadd.xlane.f32.xlu0 %v1184
    %v1186 = vpop.xlane.xlu0 %1185
    %v1187 = vsel %vm1089, %v1151, 0.0
    %1188 = vadd.xlane.f32.xlu0 %v1187
    %v1189 = vpop.xlane.xlu0 %1188
    %v1190 = vsel %vm1089, %v1152, 0.0
    %1191 = vadd.xlane.f32.xlu0 %v1190
    %v1192 = vpop.xlane.xlu0 %1191
    %v1193 = vsel %vm1089, %v1153, 0.0
    %1194 = vadd.xlane.f32.xlu0 %v1193
    %v1195 = vpop.xlane.xlu0 %1194
    %v1196 = vsel %vm1089, %v1154, 0.0
    %1197 = vadd.xlane.f32.xlu0 %v1196
    %v1198 = vpop.xlane.xlu0 %1197
    %v1199 = vsel %vm1089, %v1155, 0.0
    %1200 = vadd.xlane.f32.xlu0 %v1199
    %v1201 = vpop.xlane.xlu0 %1200
    %v1202 = vsel %vm1089, %v1156, 0.0
    %1203 = vadd.xlane.f32.xlu0 %v1202
    %v1204 = vpop.xlane.xlu0 %1203
    %v1205 = vrcp.pop 32.0
    %v1206 = vmul.f32 %v1159, %v1205
    %v1207 = vmul.f32 %v1162, %v1205
    %v1208 = vmul.f32 %v1165, %v1205
    %v1209 = vmul.f32 %v1168, %v1205
    %v1210 = vmul.f32 %v1171, %v1205
    %v1211 = vmul.f32 %v1174, %v1205
    %v1212 = vmul.f32 %v1177, %v1205
    %v1213 = vmul.f32 %v1180, %v1205
    %v1214 = vmul.f32 %v1183, %v1205
    %v1215 = vmul.f32 %v1186, %v1205
    %v1216 = vmul.f32 %v1189, %v1205
    %v1217 = vmul.f32 %v1192, %v1205
    %v1218 = vmul.f32 %v1195, %v1205
    %v1219 = vmul.f32 %v1198, %v1205
    %v1220 = vmul.f32 %v1201, %v1205
    %v1221 = vmul.f32 %v1204, %v1205
    %v1222 = vsub.f32 %v1141, %v1206
    %v1223 = vsub.f32 %v1142, %v1207
    %v1224 = vsub.f32 %v1143, %v1208
    %v1225 = vsub.f32 %v1144, %v1209
    %v1226 = vsub.f32 %v1145, %v1210
    %v1227 = vsub.f32 %v1146, %v1211
    %v1228 = vsub.f32 %v1147, %v1212
    %v1229 = vsub.f32 %v1148, %v1213
    %v1230 = vsub.f32 %v1149, %v1214
    %v1231 = vsub.f32 %v1150, %v1215
    %v1232 = vsub.f32 %v1151, %v1216
    %v1233 = vsub.f32 %v1152, %v1217
    %v1234 = vsub.f32 %v1153, %v1218
    %v1235 = vsub.f32 %v1154, %v1219
    %v1236 = vsub.f32 %v1155, %v1220
    %v1237 = vsub.f32 %v1156, %v1221
    %v1238 = vmul.f32 %v1222, %v1222
    %v1239 = vmul.f32 %v1223, %v1223
    %v1240 = vmul.f32 %v1224, %v1224
    %v1241 = vmul.f32 %v1225, %v1225
    %v1242 = vmul.f32 %v1226, %v1226
    %v1243 = vmul.f32 %v1227, %v1227
    %v1244 = vmul.f32 %v1228, %v1228
    %v1245 = vmul.f32 %v1229, %v1229
    %v1246 = vmul.f32 %v1230, %v1230
    %v1247 = vmul.f32 %v1231, %v1231
    %v1248 = vmul.f32 %v1232, %v1232
    %v1249 = vmul.f32 %v1233, %v1233
    %v1250 = vmul.f32 %v1234, %v1234
    %v1251 = vmul.f32 %v1235, %v1235
    %v1252 = vmul.f32 %v1236, %v1236
    %v1253 = vmul.f32 %v1237, %v1237
    %v1254 = vsel %vm1089, %v1238, 0.0
    %1255 = vadd.xlane.f32.xlu0 %v1254
    %v1256 = vpop.xlane.xlu0 %1255
    %v1257 = vsel %vm1089, %v1239, 0.0
    %1258 = vadd.xlane.f32.xlu0 %v1257
    %v1259 = vpop.xlane.xlu0 %1258
    %v1260 = vsel %vm1089, %v1240, 0.0
    %1261 = vadd.xlane.f32.xlu0 %v1260
    %v1262 = vpop.xlane.xlu0 %1261
    %v1263 = vsel %vm1089, %v1241, 0.0
    %1264 = vadd.xlane.f32.xlu0 %v1263
    %v1265 = vpop.xlane.xlu0 %1264
    %v1266 = vsel %vm1089, %v1242, 0.0
    %1267 = vadd.xlane.f32.xlu0 %v1266
    %v1268 = vpop.xlane.xlu0 %1267
    %v1269 = vsel %vm1089, %v1243, 0.0
    %1270 = vadd.xlane.f32.xlu0 %v1269
    %v1271 = vpop.xlane.xlu0 %1270
    %v1272 = vsel %vm1089, %v1244, 0.0
    %1273 = vadd.xlane.f32.xlu0 %v1272
    %v1274 = vpop.xlane.xlu0 %1273
    %v1275 = vsel %vm1089, %v1245, 0.0
    %1276 = vadd.xlane.f32.xlu0 %v1275
    %v1277 = vpop.xlane.xlu0 %1276
    %v1278 = vsel %vm1089, %v1246, 0.0
    %1279 = vadd.xlane.f32.xlu0 %v1278
    %v1280 = vpop.xlane.xlu0 %1279
    %v1281 = vsel %vm1089, %v1247, 0.0
    %1282 = vadd.xlane.f32.xlu0 %v1281
    %v1283 = vpop.xlane.xlu0 %1282
    %v1284 = vsel %vm1089, %v1248, 0.0
    %1285 = vadd.xlane.f32.xlu0 %v1284
    %v1286 = vpop.xlane.xlu0 %1285
    %v1287 = vsel %vm1089, %v1249, 0.0
    %1288 = vadd.xlane.f32.xlu0 %v1287
    %v1289 = vpop.xlane.xlu0 %1288
    %v1290 = vsel %vm1089, %v1250, 0.0
    %1291 = vadd.xlane.f32.xlu0 %v1290
    %v1292 = vpop.xlane.xlu0 %1291
    %v1293 = vsel %vm1089, %v1251, 0.0
    %1294 = vadd.xlane.f32.xlu0 %v1293
    %v1295 = vpop.xlane.xlu0 %1294
    %v1296 = vsel %vm1089, %v1252, 0.0
    %1297 = vadd.xlane.f32.xlu0 %v1296
    %v1298 = vpop.xlane.xlu0 %1297
    %v1299 = vsel %vm1089, %v1253, 0.0
    %1300 = vadd.xlane.f32.xlu0 %v1299
    %v1301 = vpop.xlane.xlu0 %1300
    %v1302 = vmul.f32 %v1256, %v1205
    %v1303 = vmul.f32 %v1259, %v1205
    %v1304 = vmul.f32 %v1262, %v1205
    %v1305 = vmul.f32 %v1265, %v1205
    %v1306 = vmul.f32 %v1268, %v1205
    %v1307 = vmul.f32 %v1271, %v1205
    %v1308 = vmul.f32 %v1274, %v1205
    %v1309 = vmul.f32 %v1277, %v1205
    %v1310 = vmul.f32 %v1280, %v1205
    %v1311 = vmul.f32 %v1283, %v1205
    %v1312 = vmul.f32 %v1286, %v1205
    %v1313 = vmul.f32 %v1289, %v1205
    %v1314 = vmul.f32 %v1292, %v1205
    %v1315 = vmul.f32 %v1295, %v1205
    %v1316 = vmul.f32 %v1298, %v1205
    %v1317 = vmul.f32 %v1301, %v1205
    %v1318 = vadd.f32 %v1302, 1e-05
    %v1319 = vadd.f32 %v1303, 1e-05
    %v1320 = vadd.f32 %v1304, 1e-05
    %v1321 = vadd.f32 %v1305, 1e-05
    %v1322 = vadd.f32 %v1306, 1e-05
    %v1323 = vadd.f32 %v1307, 1e-05
    %v1324 = vadd.f32 %v1308, 1e-05
    %v1325 = vadd.f32 %v1309, 1e-05
    %v1326 = vadd.f32 %v1310, 1e-05
    %v1327 = vadd.f32 %v1311, 1e-05
    %v1328 = vadd.f32 %v1312, 1e-05
    %v1329 = vadd.f32 %v1313, 1e-05
    %v1330 = vadd.f32 %v1314, 1e-05
    %v1331 = vadd.f32 %v1315, 1e-05
    %v1332 = vadd.f32 %v1316, 1e-05
    %v1333 = vadd.f32 %v1317, 1e-05
    %v1334 = vrsqrt.pop %v1318
    %v1335 = vrsqrt.pop %v1319
    %v1336 = vrsqrt.pop %v1320
    %v1337 = vrsqrt.pop %v1321
    %v1338 = vrsqrt.pop %v1322
    %v1339 = vrsqrt.pop %v1323
    %v1340 = vrsqrt.pop %v1324
    %v1341 = vrsqrt.pop %v1325
    %v1342 = vrsqrt.pop %v1326
    %v1343 = vrsqrt.pop %v1327
    %v1344 = vrsqrt.pop %v1328
    %v1345 = vrsqrt.pop %v1329
    %v1346 = vrsqrt.pop %v1330
    %v1347 = vrsqrt.pop %v1331
    %v1348 = vrsqrt.pop %v1332
    %v1349 = vrsqrt.pop %v1333
    %v1350 = vmul.f32 %v1222, %v1334
    %v1351 = vmul.f32 %v1223, %v1335
    %v1352 = vmul.f32 %v1224, %v1336
    %v1353 = vmul.f32 %v1225, %v1337
    %v1354 = vmul.f32 %v1226, %v1338
    %v1355 = vmul.f32 %v1227, %v1339
    %v1356 = vmul.f32 %v1228, %v1340
    %v1357 = vmul.f32 %v1229, %v1341
    %v1358 = vmul.f32 %v1230, %v1342
    %v1359 = vmul.f32 %v1231, %v1343
    %v1360 = vmul.f32 %v1232, %v1344
    %v1361 = vmul.f32 %v1233, %v1345
    %v1362 = vmul.f32 %v1234, %v1346
    %v1363 = vmul.f32 %v1235, %v1347
    %v1364 = vmul.f32 %v1236, %v1348
    %v1365 = vmul.f32 %v1237, %v1349
    %v1366 = vlaneseq
    %v1367 = vshrl.u32 %v1366, 7
    %v1368 = vsub.s32 1, %v1367
    %v1369 = vrot.slane %v47, %v1368
    %v1370 = vmul.f32 %v1350, %v1369
    %v1371 = vmul.f32 %v1351, %v1369
    %v1372 = vmul.f32 %v1352, %v1369
    %v1373 = vmul.f32 %v1353, %v1369
    %v1374 = vmul.f32 %v1354, %v1369
    %v1375 = vmul.f32 %v1355, %v1369
    %v1376 = vmul.f32 %v1356, %v1369
    %v1377 = vmul.f32 %v1357, %v1369
    %v1378 = vmul.f32 %v1358, %v1369
    %v1379 = vmul.f32 %v1359, %v1369
    %v1380 = vmul.f32 %v1360, %v1369
    %v1381 = vmul.f32 %v1361, %v1369
    %v1382 = vmul.f32 %v1362, %v1369
    %v1383 = vmul.f32 %v1363, %v1369
    %v1384 = vmul.f32 %v1364, %v1369
    %v1385 = vmul.f32 %v1365, %v1369
    %v1386 = vlaneseq
    %v1387 = vshrl.u32 %v1386, 7
    %v1388 = vsub.s32 2, %v1387
    %v1389 = vrot.slane %v47, %v1388
    %v1390 = vadd.f32 %v1370, %v1389
    %v1391 = vadd.f32 %v1371, %v1389
    %v1392 = vadd.f32 %v1372, %v1389
    %v1393 = vadd.f32 %v1373, %v1389
    %v1394 = vadd.f32 %v1374, %v1389
    %v1395 = vadd.f32 %v1375, %v1389
    %v1396 = vadd.f32 %v1376, %v1389
    %v1397 = vadd.f32 %v1377, %v1389
    %v1398 = vadd.f32 %v1378, %v1389
    %v1399 = vadd.f32 %v1379, %v1389
    %v1400 = vadd.f32 %v1380, %v1389
    %v1401 = vadd.f32 %v1381, %v1389
    %v1402 = vadd.f32 %v1382, %v1389
    %v1403 = vadd.f32 %v1383, %v1389
    %v1404 = vadd.f32 %v1384, %v1389
    %v1405 = vadd.f32 %v1385, %v1389
    %vm1406 = vcmp.gt.f32.partialorder %v1390, 0.0
    %vm1407 = vcmp.gt.f32.partialorder %v1391, 0.0
    %vm1408 = vcmp.gt.f32.partialorder %v1392, 0.0
    %vm1409 = vcmp.gt.f32.partialorder %v1393, 0.0
    %vm1410 = vcmp.gt.f32.partialorder %v1394, 0.0
    %vm1411 = vcmp.gt.f32.partialorder %v1395, 0.0
    %vm1412 = vcmp.gt.f32.partialorder %v1396, 0.0
    %vm1413 = vcmp.gt.f32.partialorder %v1397, 0.0
    %vm1414 = vcmp.gt.f32.partialorder %v1398, 0.0
    %vm1415 = vcmp.gt.f32.partialorder %v1399, 0.0
    %vm1416 = vcmp.gt.f32.partialorder %v1400, 0.0
    %vm1417 = vcmp.gt.f32.partialorder %v1401, 0.0
    %vm1418 = vcmp.gt.f32.partialorder %v1402, 0.0
    %vm1419 = vcmp.gt.f32.partialorder %v1403, 0.0
    %vm1420 = vcmp.gt.f32.partialorder %v1404, 0.0
    %vm1421 = vcmp.gt.f32.partialorder %v1405, 0.0
    %v1422 = vmin.f32 %v1390, 0.0
    %v1423 = vmin.f32 %v1391, 0.0
    %v1424 = vmin.f32 %v1392, 0.0
    %v1425 = vmin.f32 %v1393, 0.0
    %v1426 = vmin.f32 %v1394, 0.0
    %v1427 = vmin.f32 %v1395, 0.0
    %v1428 = vmin.f32 %v1396, 0.0
    %v1429 = vmin.f32 %v1397, 0.0
    %v1430 = vmin.f32 %v1398, 0.0
    %v1431 = vmin.f32 %v1399, 0.0
    %v1432 = vmin.f32 %v1400, 0.0
    %v1433 = vmin.f32 %v1401, 0.0
    %v1434 = vmin.f32 %v1402, 0.0
    %v1435 = vmin.f32 %v1403, 0.0
    %v1436 = vmin.f32 %v1404, 0.0
    %v1437 = vmin.f32 %v1405, 0.0
    %v1438 = vmul.f32 %v1422, 1.442695
    %v1439 = vpow.pop %v1438
    %v1440 = vmul.f32 %v1423, 1.442695
    %v1441 = vpow.pop %v1440
    %v1442 = vmul.f32 %v1424, 1.442695
    %v1443 = vpow.pop %v1442
    %v1444 = vmul.f32 %v1425, 1.442695
    %v1445 = vpow.pop %v1444
    %v1446 = vmul.f32 %v1426, 1.442695
    %v1447 = vpow.pop %v1446
    %v1448 = vmul.f32 %v1427, 1.442695
    %v1449 = vpow.pop %v1448
    %v1450 = vmul.f32 %v1428, 1.442695
    %v1451 = vpow.pop %v1450
    %v1452 = vmul.f32 %v1429, 1.442695
    %v1453 = vpow.pop %v1452
    %v1454 = vmul.f32 %v1430, 1.442695
    %v1455 = vpow.pop %v1454
    %v1456 = vmul.f32 %v1431, 1.442695
    %v1457 = vpow.pop %v1456
    %v1458 = vmul.f32 %v1432, 1.442695
    %v1459 = vpow.pop %v1458
    %v1460 = vmul.f32 %v1433, 1.442695
    %v1461 = vpow.pop %v1460
    %v1462 = vmul.f32 %v1434, 1.442695
    %v1463 = vpow.pop %v1462
    %v1464 = vmul.f32 %v1435, 1.442695
    %v1465 = vpow.pop %v1464
    %v1466 = vmul.f32 %v1436, 1.442695
    %v1467 = vpow.pop %v1466
    %v1468 = vmul.f32 %v1437, 1.442695
    %v1469 = vpow.pop %v1468
    %v1470 = vsub.f32 %v1439, 1.0
    %v1471 = vsub.f32 %v1441, 1.0
    %v1472 = vsub.f32 %v1443, 1.0
    %v1473 = vsub.f32 %v1445, 1.0
    %v1474 = vsub.f32 %v1447, 1.0
    %v1475 = vsub.f32 %v1449, 1.0
    %v1476 = vsub.f32 %v1451, 1.0
    %v1477 = vsub.f32 %v1453, 1.0
    %v1478 = vsub.f32 %v1455, 1.0
    %v1479 = vsub.f32 %v1457, 1.0
    %v1480 = vsub.f32 %v1459, 1.0
    %v1481 = vsub.f32 %v1461, 1.0
    %v1482 = vsub.f32 %v1463, 1.0
    %v1483 = vsub.f32 %v1465, 1.0
    %v1484 = vsub.f32 %v1467, 1.0
    %v1485 = vsub.f32 %v1469, 1.0
    %v1486 = vsel %vm1406, %v1390, %v1470
    %v1487 = vsel %vm1407, %v1391, %v1471
    %v1488 = vsel %vm1408, %v1392, %v1472
    %v1489 = vsel %vm1409, %v1393, %v1473
    %v1490 = vsel %vm1410, %v1394, %v1474
    %v1491 = vsel %vm1411, %v1395, %v1475
    %v1492 = vsel %vm1412, %v1396, %v1476
    %v1493 = vsel %vm1413, %v1397, %v1477
    %v1494 = vsel %vm1414, %v1398, %v1478
    %v1495 = vsel %vm1415, %v1399, %v1479
    %v1496 = vsel %vm1416, %v1400, %v1480
    %v1497 = vsel %vm1417, %v1401, %v1481
    %v1498 = vsel %vm1418, %v1402, %v1482
    %v1499 = vsel %vm1419, %v1403, %v1483
    %v1500 = vsel %vm1420, %v1404, %v1484
    %v1501 = vsel %vm1421, %v1405, %v1485
    %1518 = vrot.lane.b32.xlu0 %v1141, 96
    %v1519 = vpop.permute.xlu0 %1518
    %1520 = vrot.lane.b32.xlu0 %v1142, 96
    %v1521 = vpop.permute.xlu0 %1520
    %1522 = vrot.lane.b32.xlu0 %v1143, 96
    %v1523 = vpop.permute.xlu0 %1522
    %1524 = vrot.lane.b32.xlu0 %v1144, 96
    %v1525 = vpop.permute.xlu0 %1524
    %1526 = vrot.lane.b32.xlu0 %v1145, 96
    %v1527 = vpop.permute.xlu0 %1526
    %1528 = vrot.lane.b32.xlu0 %v1146, 96
    %v1529 = vpop.permute.xlu0 %1528
    %1530 = vrot.lane.b32.xlu0 %v1147, 96
    %v1531 = vpop.permute.xlu0 %1530
    %1532 = vrot.lane.b32.xlu0 %v1148, 96
    %v1533 = vpop.permute.xlu0 %1532
    %1534 = vrot.lane.b32.xlu0 %v1149, 96
    %v1535 = vpop.permute.xlu0 %1534
    %1536 = vrot.lane.b32.xlu0 %v1150, 96
    %v1537 = vpop.permute.xlu0 %1536
    %1538 = vrot.lane.b32.xlu0 %v1151, 96
    %v1539 = vpop.permute.xlu0 %1538
    %1540 = vrot.lane.b32.xlu0 %v1152, 96
    %v1541 = vpop.permute.xlu0 %1540
    %1542 = vrot.lane.b32.xlu0 %v1153, 96
    %v1543 = vpop.permute.xlu0 %1542
    %1544 = vrot.lane.b32.xlu0 %v1154, 96
    %v1545 = vpop.permute.xlu0 %1544
    %1546 = vrot.lane.b32.xlu0 %v1155, 96
    %v1547 = vpop.permute.xlu0 %1546
    %1548 = vrot.lane.b32.xlu0 %v1156, 96
    %v1549 = vpop.permute.xlu0 %1548
    %v1566 = vsel %vm1089, %v1519, 0.0
    %1567 = vadd.xlane.f32.xlu0 %v1566
    %v1568 = vpop.xlane.xlu0 %1567
    %v1569 = vsel %vm1089, %v1521, 0.0
    %1570 = vadd.xlane.f32.xlu0 %v1569
    %v1571 = vpop.xlane.xlu0 %1570
    %v1572 = vsel %vm1089, %v1523, 0.0
    %1573 = vadd.xlane.f32.xlu0 %v1572
    %v1574 = vpop.xlane.xlu0 %1573
    %v1575 = vsel %vm1089, %v1525, 0.0
    %1576 = vadd.xlane.f32.xlu0 %v1575
    %v1577 = vpop.xlane.xlu0 %1576
    %v1578 = vsel %vm1089, %v1527, 0.0
    %1579 = vadd.xlane.f32.xlu0 %v1578
    %v1580 = vpop.xlane.xlu0 %1579
    %v1581 = vsel %vm1089, %v1529, 0.0
    %1582 = vadd.xlane.f32.xlu0 %v1581
    %v1583 = vpop.xlane.xlu0 %1582
    %v1584 = vsel %vm1089, %v1531, 0.0
    %1585 = vadd.xlane.f32.xlu0 %v1584
    %v1586 = vpop.xlane.xlu0 %1585
    %v1587 = vsel %vm1089, %v1533, 0.0
    %1588 = vadd.xlane.f32.xlu0 %v1587
    %v1589 = vpop.xlane.xlu0 %1588
    %v1590 = vsel %vm1089, %v1535, 0.0
    %1591 = vadd.xlane.f32.xlu0 %v1590
    %v1592 = vpop.xlane.xlu0 %1591
    %v1593 = vsel %vm1089, %v1537, 0.0
    %1594 = vadd.xlane.f32.xlu0 %v1593
    %v1595 = vpop.xlane.xlu0 %1594
    %v1596 = vsel %vm1089, %v1539, 0.0
    %1597 = vadd.xlane.f32.xlu0 %v1596
    %v1598 = vpop.xlane.xlu0 %1597
    %v1599 = vsel %vm1089, %v1541, 0.0
    %1600 = vadd.xlane.f32.xlu0 %v1599
    %v1601 = vpop.xlane.xlu0 %1600
    %v1602 = vsel %vm1089, %v1543, 0.0
    %1603 = vadd.xlane.f32.xlu0 %v1602
    %v1604 = vpop.xlane.xlu0 %1603
    %v1605 = vsel %vm1089, %v1545, 0.0
    %1606 = vadd.xlane.f32.xlu0 %v1605
    %v1607 = vpop.xlane.xlu0 %1606
    %v1608 = vsel %vm1089, %v1547, 0.0
    %1609 = vadd.xlane.f32.xlu0 %v1608
    %v1610 = vpop.xlane.xlu0 %1609
    %v1611 = vsel %vm1089, %v1549, 0.0
    %1612 = vadd.xlane.f32.xlu0 %v1611
    %v1613 = vpop.xlane.xlu0 %1612
    %v1614 = vmul.f32 %v1568, %v1205
    %v1615 = vmul.f32 %v1571, %v1205
    %v1616 = vmul.f32 %v1574, %v1205
    %v1617 = vmul.f32 %v1577, %v1205
    %v1618 = vmul.f32 %v1580, %v1205
    %v1619 = vmul.f32 %v1583, %v1205
    %v1620 = vmul.f32 %v1586, %v1205
    %v1621 = vmul.f32 %v1589, %v1205
    %v1622 = vmul.f32 %v1592, %v1205
    %v1623 = vmul.f32 %v1595, %v1205
    %v1624 = vmul.f32 %v1598, %v1205
    %v1625 = vmul.f32 %v1601, %v1205
    %v1626 = vmul.f32 %v1604, %v1205
    %v1627 = vmul.f32 %v1607, %v1205
    %v1628 = vmul.f32 %v1610, %v1205
    %v1629 = vmul.f32 %v1613, %v1205
    %v1630 = vsub.f32 %v1141, %v1614
    %v1631 = vsub.f32 %v1142, %v1615
    %v1632 = vsub.f32 %v1143, %v1616
    %v1633 = vsub.f32 %v1144, %v1617
    %v1634 = vsub.f32 %v1145, %v1618
    %v1635 = vsub.f32 %v1146, %v1619
    %v1636 = vsub.f32 %v1147, %v1620
    %v1637 = vsub.f32 %v1148, %v1621
    %v1638 = vsub.f32 %v1149, %v1622
    %v1639 = vsub.f32 %v1150, %v1623
    %v1640 = vsub.f32 %v1151, %v1624
    %v1641 = vsub.f32 %v1152, %v1625
    %v1642 = vsub.f32 %v1153, %v1626
    %v1643 = vsub.f32 %v1154, %v1627
    %v1644 = vsub.f32 %v1155, %v1628
    %v1645 = vsub.f32 %v1156, %v1629
    %v1646 = vmul.f32 %v1630, %v1630
    %v1647 = vmul.f32 %v1631, %v1631
    %v1648 = vmul.f32 %v1632, %v1632
    %v1649 = vmul.f32 %v1633, %v1633
    %v1650 = vmul.f32 %v1634, %v1634
    %v1651 = vmul.f32 %v1635, %v1635
    %v1652 = vmul.f32 %v1636, %v1636
    %v1653 = vmul.f32 %v1637, %v1637
    %v1654 = vmul.f32 %v1638, %v1638
    %v1655 = vmul.f32 %v1639, %v1639
    %v1656 = vmul.f32 %v1640, %v1640
    %v1657 = vmul.f32 %v1641, %v1641
    %v1658 = vmul.f32 %v1642, %v1642
    %v1659 = vmul.f32 %v1643, %v1643
    %v1660 = vmul.f32 %v1644, %v1644
    %v1661 = vmul.f32 %v1645, %v1645
    %1678 = vrot.lane.b32.xlu0 %v1646, 96
    %v1679 = vpop.permute.xlu0 %1678
    %1680 = vrot.lane.b32.xlu0 %v1647, 96
    %v1681 = vpop.permute.xlu0 %1680
    %1682 = vrot.lane.b32.xlu0 %v1648, 96
    %v1683 = vpop.permute.xlu0 %1682
    %1684 = vrot.lane.b32.xlu0 %v1649, 96
    %v1685 = vpop.permute.xlu0 %1684
    %1686 = vrot.lane.b32.xlu0 %v1650, 96
    %v1687 = vpop.permute.xlu0 %1686
    %1688 = vrot.lane.b32.xlu0 %v1651, 96
    %v1689 = vpop.permute.xlu0 %1688
    %1690 = vrot.lane.b32.xlu0 %v1652, 96
    %v1691 = vpop.permute.xlu0 %1690
    %1692 = vrot.lane.b32.xlu0 %v1653, 96
    %v1693 = vpop.permute.xlu0 %1692
    %1694 = vrot.lane.b32.xlu0 %v1654, 96
    %v1695 = vpop.permute.xlu0 %1694
    %1696 = vrot.lane.b32.xlu0 %v1655, 96
    %v1697 = vpop.permute.xlu0 %1696
    %1698 = vrot.lane.b32.xlu0 %v1656, 96
    %v1699 = vpop.permute.xlu0 %1698
    %1700 = vrot.lane.b32.xlu0 %v1657, 96
    %v1701 = vpop.permute.xlu0 %1700
    %1702 = vrot.lane.b32.xlu0 %v1658, 96
    %v1703 = vpop.permute.xlu0 %1702
    %1704 = vrot.lane.b32.xlu0 %v1659, 96
    %v1705 = vpop.permute.xlu0 %1704
    %1706 = vrot.lane.b32.xlu0 %v1660, 96
    %v1707 = vpop.permute.xlu0 %1706
    %1708 = vrot.lane.b32.xlu0 %v1661, 96
    %v1709 = vpop.permute.xlu0 %1708
    %v1726 = vsel %vm1089, %v1679, 0.0
    %1727 = vadd.xlane.f32.xlu0 %v1726
    %v1728 = vpop.xlane.xlu0 %1727
    %v1729 = vsel %vm1089, %v1681, 0.0
    %1730 = vadd.xlane.f32.xlu0 %v1729
    %v1731 = vpop.xlane.xlu0 %1730
    %v1732 = vsel %vm1089, %v1683, 0.0
    %1733 = vadd.xlane.f32.xlu0 %v1732
    %v1734 = vpop.xlane.xlu0 %1733
    %v1735 = vsel %vm1089, %v1685, 0.0
    %1736 = vadd.xlane.f32.xlu0 %v1735
    %v1737 = vpop.xlane.xlu0 %1736
    %v1738 = vsel %vm1089, %v1687, 0.0
    %1739 = vadd.xlane.f32.xlu0 %v1738
    %v1740 = vpop.xlane.xlu0 %1739
    %v1741 = vsel %vm1089, %v1689, 0.0
    %1742 = vadd.xlane.f32.xlu0 %v1741
    %v1743 = vpop.xlane.xlu0 %1742
    %v1744 = vsel %vm1089, %v1691, 0.0
    %1745 = vadd.xlane.f32.xlu0 %v1744
    %v1746 = vpop.xlane.xlu0 %1745
    %v1747 = vsel %vm1089, %v1693, 0.0
    %1748 = vadd.xlane.f32.xlu0 %v1747
    %v1749 = vpop.xlane.xlu0 %1748
    %v1750 = vsel %vm1089, %v1695, 0.0
    %1751 = vadd.xlane.f32.xlu0 %v1750
    %v1752 = vpop.xlane.xlu0 %1751
    %v1753 = vsel %vm1089, %v1697, 0.0
    %1754 = vadd.xlane.f32.xlu0 %v1753
    %v1755 = vpop.xlane.xlu0 %1754
    %v1756 = vsel %vm1089, %v1699, 0.0
    %1757 = vadd.xlane.f32.xlu0 %v1756
    %v1758 = vpop.xlane.xlu0 %1757
    %v1759 = vsel %vm1089, %v1701, 0.0
    %1760 = vadd.xlane.f32.xlu0 %v1759
    %v1761 = vpop.xlane.xlu0 %1760
    %v1762 = vsel %vm1089, %v1703, 0.0
    %1763 = vadd.xlane.f32.xlu0 %v1762
    %v1764 = vpop.xlane.xlu0 %1763
    %v1765 = vsel %vm1089, %v1705, 0.0
    %1766 = vadd.xlane.f32.xlu0 %v1765
    %v1767 = vpop.xlane.xlu0 %1766
    %v1768 = vsel %vm1089, %v1707, 0.0
    %1769 = vadd.xlane.f32.xlu0 %v1768
    %v1770 = vpop.xlane.xlu0 %1769
    %v1771 = vsel %vm1089, %v1709, 0.0
    %1772 = vadd.xlane.f32.xlu0 %v1771
    %v1773 = vpop.xlane.xlu0 %1772
    %v1774 = vmul.f32 %v1728, %v1205
    %v1775 = vmul.f32 %v1731, %v1205
    %v1776 = vmul.f32 %v1734, %v1205
    %v1777 = vmul.f32 %v1737, %v1205
    %v1778 = vmul.f32 %v1740, %v1205
    %v1779 = vmul.f32 %v1743, %v1205
    %v1780 = vmul.f32 %v1746, %v1205
    %v1781 = vmul.f32 %v1749, %v1205
    %v1782 = vmul.f32 %v1752, %v1205
    %v1783 = vmul.f32 %v1755, %v1205
    %v1784 = vmul.f32 %v1758, %v1205
    %v1785 = vmul.f32 %v1761, %v1205
    %v1786 = vmul.f32 %v1764, %v1205
    %v1787 = vmul.f32 %v1767, %v1205
    %v1788 = vmul.f32 %v1770, %v1205
    %v1789 = vmul.f32 %v1773, %v1205
    %v1790 = vadd.f32 %v1774, 1e-05
    %v1791 = vadd.f32 %v1775, 1e-05
    %v1792 = vadd.f32 %v1776, 1e-05
    %v1793 = vadd.f32 %v1777, 1e-05
    %v1794 = vadd.f32 %v1778, 1e-05
    %v1795 = vadd.f32 %v1779, 1e-05
    %v1796 = vadd.f32 %v1780, 1e-05
    %v1797 = vadd.f32 %v1781, 1e-05
    %v1798 = vadd.f32 %v1782, 1e-05
    %v1799 = vadd.f32 %v1783, 1e-05
    %v1800 = vadd.f32 %v1784, 1e-05
    %v1801 = vadd.f32 %v1785, 1e-05
    %v1802 = vadd.f32 %v1786, 1e-05
    %v1803 = vadd.f32 %v1787, 1e-05
    %v1804 = vadd.f32 %v1788, 1e-05
    %v1805 = vadd.f32 %v1789, 1e-05
    %v1806 = vrsqrt.pop %v1790
    %v1807 = vrsqrt.pop %v1791
    %v1808 = vrsqrt.pop %v1792
    %v1809 = vrsqrt.pop %v1793
    %v1810 = vrsqrt.pop %v1794
    %v1811 = vrsqrt.pop %v1795
    %v1812 = vrsqrt.pop %v1796
    %v1813 = vrsqrt.pop %v1797
    %v1814 = vrsqrt.pop %v1798
    %v1815 = vrsqrt.pop %v1799
    %v1816 = vrsqrt.pop %v1800
    %v1817 = vrsqrt.pop %v1801
    %v1818 = vrsqrt.pop %v1802
    %v1819 = vrsqrt.pop %v1803
    %v1820 = vrsqrt.pop %v1804
    %v1821 = vrsqrt.pop %v1805
    %v1822 = vmul.f32 %v1630, %v1806
    %v1823 = vmul.f32 %v1631, %v1807
    %v1824 = vmul.f32 %v1632, %v1808
    %v1825 = vmul.f32 %v1633, %v1809
    %v1826 = vmul.f32 %v1634, %v1810
    %v1827 = vmul.f32 %v1635, %v1811
    %v1828 = vmul.f32 %v1636, %v1812
    %v1829 = vmul.f32 %v1637, %v1813
    %v1830 = vmul.f32 %v1638, %v1814
    %v1831 = vmul.f32 %v1639, %v1815
    %v1832 = vmul.f32 %v1640, %v1816
    %v1833 = vmul.f32 %v1641, %v1817
    %v1834 = vmul.f32 %v1642, %v1818
    %v1835 = vmul.f32 %v1643, %v1819
    %v1836 = vmul.f32 %v1644, %v1820
    %v1837 = vmul.f32 %v1645, %v1821
    %v1838 = vmul.f32 %v1822, %v1369
    %v1839 = vmul.f32 %v1823, %v1369
    %v1840 = vmul.f32 %v1824, %v1369
    %v1841 = vmul.f32 %v1825, %v1369
    %v1842 = vmul.f32 %v1826, %v1369
    %v1843 = vmul.f32 %v1827, %v1369
    %v1844 = vmul.f32 %v1828, %v1369
    %v1845 = vmul.f32 %v1829, %v1369
    %v1846 = vmul.f32 %v1830, %v1369
    %v1847 = vmul.f32 %v1831, %v1369
    %v1848 = vmul.f32 %v1832, %v1369
    %v1849 = vmul.f32 %v1833, %v1369
    %v1850 = vmul.f32 %v1834, %v1369
    %v1851 = vmul.f32 %v1835, %v1369
    %v1852 = vmul.f32 %v1836, %v1369
    %v1853 = vmul.f32 %v1837, %v1369
    %v1854 = vadd.f32 %v1838, %v1389
    %v1855 = vadd.f32 %v1839, %v1389
    %v1856 = vadd.f32 %v1840, %v1389
    %v1857 = vadd.f32 %v1841, %v1389
    %v1858 = vadd.f32 %v1842, %v1389
    %v1859 = vadd.f32 %v1843, %v1389
    %v1860 = vadd.f32 %v1844, %v1389
    %v1861 = vadd.f32 %v1845, %v1389
    %v1862 = vadd.f32 %v1846, %v1389
    %v1863 = vadd.f32 %v1847, %v1389
    %v1864 = vadd.f32 %v1848, %v1389
    %v1865 = vadd.f32 %v1849, %v1389
    %v1866 = vadd.f32 %v1850, %v1389
    %v1867 = vadd.f32 %v1851, %v1389
    %v1868 = vadd.f32 %v1852, %v1389
    %v1869 = vadd.f32 %v1853, %v1389
    %vm1870 = vcmp.gt.f32.partialorder %v1854, 0.0
    %vm1871 = vcmp.gt.f32.partialorder %v1855, 0.0
    %vm1872 = vcmp.gt.f32.partialorder %v1856, 0.0
    %vm1873 = vcmp.gt.f32.partialorder %v1857, 0.0
    %vm1874 = vcmp.gt.f32.partialorder %v1858, 0.0
    %vm1875 = vcmp.gt.f32.partialorder %v1859, 0.0
    %vm1876 = vcmp.gt.f32.partialorder %v1860, 0.0
    %vm1877 = vcmp.gt.f32.partialorder %v1861, 0.0
    %vm1878 = vcmp.gt.f32.partialorder %v1862, 0.0
    %vm1879 = vcmp.gt.f32.partialorder %v1863, 0.0
    %vm1880 = vcmp.gt.f32.partialorder %v1864, 0.0
    %vm1881 = vcmp.gt.f32.partialorder %v1865, 0.0
    %vm1882 = vcmp.gt.f32.partialorder %v1866, 0.0
    %vm1883 = vcmp.gt.f32.partialorder %v1867, 0.0
    %vm1884 = vcmp.gt.f32.partialorder %v1868, 0.0
    %vm1885 = vcmp.gt.f32.partialorder %v1869, 0.0
    %v1886 = vmin.f32 %v1854, 0.0
    %v1887 = vmin.f32 %v1855, 0.0
    %v1888 = vmin.f32 %v1856, 0.0
    %v1889 = vmin.f32 %v1857, 0.0
    %v1890 = vmin.f32 %v1858, 0.0
    %v1891 = vmin.f32 %v1859, 0.0
    %v1892 = vmin.f32 %v1860, 0.0
    %v1893 = vmin.f32 %v1861, 0.0
    %v1894 = vmin.f32 %v1862, 0.0
    %v1895 = vmin.f32 %v1863, 0.0
    %v1896 = vmin.f32 %v1864, 0.0
    %v1897 = vmin.f32 %v1865, 0.0
    %v1898 = vmin.f32 %v1866, 0.0
    %v1899 = vmin.f32 %v1867, 0.0
    %v1900 = vmin.f32 %v1868, 0.0
    %v1901 = vmin.f32 %v1869, 0.0
    %v1902 = vmul.f32 %v1886, 1.442695
    %v1903 = vpow.pop %v1902
    %v1904 = vmul.f32 %v1887, 1.442695
    %v1905 = vpow.pop %v1904
    %v1906 = vmul.f32 %v1888, 1.442695
    %v1907 = vpow.pop %v1906
    %v1908 = vmul.f32 %v1889, 1.442695
    %v1909 = vpow.pop %v1908
    %v1910 = vmul.f32 %v1890, 1.442695
    %v1911 = vpow.pop %v1910
    %v1912 = vmul.f32 %v1891, 1.442695
    %v1913 = vpow.pop %v1912
    %v1914 = vmul.f32 %v1892, 1.442695
    %v1915 = vpow.pop %v1914
    %v1916 = vmul.f32 %v1893, 1.442695
    %v1917 = vpow.pop %v1916
    %v1918 = vmul.f32 %v1894, 1.442695
    %v1919 = vpow.pop %v1918
    %v1920 = vmul.f32 %v1895, 1.442695
    %v1921 = vpow.pop %v1920
    %v1922 = vmul.f32 %v1896, 1.442695
    %v1923 = vpow.pop %v1922
    %v1924 = vmul.f32 %v1897, 1.442695
    %v1925 = vpow.pop %v1924
    %v1926 = vmul.f32 %v1898, 1.442695
    %v1927 = vpow.pop %v1926
    %v1928 = vmul.f32 %v1899, 1.442695
    %v1929 = vpow.pop %v1928
    %v1930 = vmul.f32 %v1900, 1.442695
    %v1931 = vpow.pop %v1930
    %v1932 = vmul.f32 %v1901, 1.442695
    %v1933 = vpow.pop %v1932
    %v1934 = vsub.f32 %v1903, 1.0
    %v1935 = vsub.f32 %v1905, 1.0
    %v1936 = vsub.f32 %v1907, 1.0
    %v1937 = vsub.f32 %v1909, 1.0
    %v1938 = vsub.f32 %v1911, 1.0
    %v1939 = vsub.f32 %v1913, 1.0
    %v1940 = vsub.f32 %v1915, 1.0
    %v1941 = vsub.f32 %v1917, 1.0
    %v1942 = vsub.f32 %v1919, 1.0
    %v1943 = vsub.f32 %v1921, 1.0
    %v1944 = vsub.f32 %v1923, 1.0
    %v1945 = vsub.f32 %v1925, 1.0
    %v1946 = vsub.f32 %v1927, 1.0
    %v1947 = vsub.f32 %v1929, 1.0
    %v1948 = vsub.f32 %v1931, 1.0
    %v1949 = vsub.f32 %v1933, 1.0
    %v1950 = vsel %vm1870, %v1854, %v1934
    %v1951 = vsel %vm1871, %v1855, %v1935
    %v1952 = vsel %vm1872, %v1856, %v1936
    %v1953 = vsel %vm1873, %v1857, %v1937
    %v1954 = vsel %vm1874, %v1858, %v1938
    %v1955 = vsel %vm1875, %v1859, %v1939
    %v1956 = vsel %vm1876, %v1860, %v1940
    %v1957 = vsel %vm1877, %v1861, %v1941
    %v1958 = vsel %vm1878, %v1862, %v1942
    %v1959 = vsel %vm1879, %v1863, %v1943
    %v1960 = vsel %vm1880, %v1864, %v1944
    %v1961 = vsel %vm1881, %v1865, %v1945
    %v1962 = vsel %vm1882, %v1866, %v1946
    %v1963 = vsel %vm1883, %v1867, %v1947
    %v1964 = vsel %vm1884, %v1868, %v1948
    %v1965 = vsel %vm1885, %v1869, %v1949
    %v1966 = vsel %vm1089, %v1486, %v1950
    %v1967 = vsel %vm1089, %v1487, %v1951
    %v1968 = vsel %vm1089, %v1488, %v1952
    %v1969 = vsel %vm1089, %v1489, %v1953
    %v1970 = vsel %vm1089, %v1490, %v1954
    %v1971 = vsel %vm1089, %v1491, %v1955
    %v1972 = vsel %vm1089, %v1492, %v1956
    %v1973 = vsel %vm1089, %v1493, %v1957
    %v1974 = vsel %vm1089, %v1494, %v1958
    %v1975 = vsel %vm1089, %v1495, %v1959
    %v1976 = vsel %vm1089, %v1496, %v1960
    %v1977 = vsel %vm1089, %v1497, %v1961
    %v1978 = vsel %vm1089, %v1498, %v1962
    %v1979 = vsel %vm1089, %v1499, %v1963
    %v1980 = vsel %vm1089, %v1500, %v1964
    %v1981 = vsel %vm1089, %v1501, %v1965
    %1982 = vst.msk [vmem:[%s6] sm:$0xff] %vm88, %v1966
    %1983 = vst.msk [vmem:[%s6 + $0x8] sm:$0xff] %vm88, %v1967
    %1984 = vst.msk [vmem:[%s6 + $0x10] sm:$0xff] %vm88, %v1968
    %1985 = vst.msk [vmem:[%s6 + $0x18] sm:$0xff] %vm88, %v1969
    %1986 = vst.msk [vmem:[%s6 + $0x20] sm:$0xff] %vm88, %v1970
    %1987 = vst.msk [vmem:[%s6 + $0x28] sm:$0xff] %vm88, %v1971
    %1988 = vst.msk [vmem:[%s6 + $0x30] sm:$0xff] %vm88, %v1972
    %1989 = vst.msk [vmem:[%s6 + $0x38] sm:$0xff] %vm88, %v1973
    %1990 = vst.msk [vmem:[%s6 + $0x40] sm:$0xff] %vm88, %v1974
    %1991 = vst.msk [vmem:[%s6 + $0x48] sm:$0xff] %vm88, %v1975
    %1992 = vst.msk [vmem:[%s6 + $0x50] sm:$0xff] %vm88, %v1976
    %1993 = vst.msk [vmem:[%s6 + $0x58] sm:$0xff] %vm88, %v1977
    %1994 = vst.msk [vmem:[%s6 + $0x60] sm:$0xff] %vm88, %v1978
    %1995 = vst.msk [vmem:[%s6 + $0x68] sm:$0xff] %vm88, %v1979
    %1996 = vst.msk [vmem:[%s6 + $0x70] sm:$0xff] %vm88, %v1980
    %1997 = vst.msk [vmem:[%s6 + $0x78] sm:$0xff] %vm88, %v1981
  $region33: #{tpu_custom_call.1} parent=0 // pred_fallthru
    _
  // Predicated region
  $region34: #{tpu_custom_call.1} parent=0 // pred_check
    _
  $region35: #{tpu_custom_call.1} parent=0 // pred_check_branch
    %1999 = sbr.rel (0) target = $region37
  $region36: #{tpu_custom_call.1} parent=0 // pred_region
    _
  $region37: #{tpu_custom_call.1} parent=0 // pred_fallthru
    _
  // Predicated region
  $region38: #{tpu_custom_call.1} parent=0 // pred_check
    _
  $region39: #{tpu_custom_call.1} parent=0 // pred_check_branch
    %2001 = sbr.rel (0) target = $region41
  $region40: #{tpu_custom_call.1} parent=0 // pred_region
    _
  $region41: #{tpu_custom_call.1} parent=0 // pred_fallthru
    _

</llo_original>
